<compile_context>
chip_gen: v5e
topology: v5e:2x2
jax: 0.10.0
libtpu: 0.0.40
codegen_flags: <defaults>
</compile_context>

<pallas_src>
import functools

import jax
import jax.numpy as jnp
from jax.experimental import pallas as pl
from jax.experimental.pallas import tpu as pltpu


def _round_up(x, m):
    return (x + m - 1) // m * m


def _gen_fused_kernel(gt_ref, ctx_ref, table_ref, w_ctx_ref, b_ref, out_ref, *,
                      compute_dtype):
    """Fused: one-hot(gt) @ (emb@w_cond)  +  ctx @ w_ctx  + b -> LeakyReLU(0.2)."""
    gt = gt_ref[...]                                            # [tm, 1] int32
    K = table_ref.shape[0]
    class_ids = jax.lax.broadcasted_iota(jnp.int32, (1, K), 1)
    # ignore_index rows -> all-zero one-hot (condition contribution = 0).
    onehot = (gt == class_ids).astype(jnp.float32).astype(compute_dtype)   # [tm, K]
    # Two MXU matmuls, f32 accumulation; bias + LeakyReLU epilogue in f32 (VPU-safe
    # on v5e which has no bf16 VPU path).
    y = (jnp.dot(onehot, table_ref[...], preferred_element_type=jnp.float32)
         + jnp.dot(ctx_ref[...], w_ctx_ref[...], preferred_element_type=jnp.float32)
         + b_ref[...])
    out_ref[...] = jnp.where(y > 0, y, 0.2 * y).astype(out_ref.dtype)


def our_model_step1(gt, contextual_nhwc, emb_vis, w_gen, b_gen, *,
                    ignore_index=255, tm=1024, compute_dtype=jnp.bfloat16):
    """Mirrors OurModel.forward(mode='step1') hot path (channels-last layout).

    gt:              int32  [B, H, W]            GT class map (target resolution)
    contextual_nhwc: float  [B, H, W, C_ctx]     backbone contextual features (NHWC)
    emb_vis:         float  [K, C_emb]           Em_vis embedding table
    w_gen:           float  [C_emb+C_ctx, C_out] generator 1x1-conv weight
    b_gen:           float  [C_out]              generator bias
    returns (predict [B, H, W, C_out], ignore_mask [B, H, W] bool)
    """
    B, H, W, C_ctx = contextual_nhwc.shape
    K, C_emb = emb_vis.shape
    C_in, C_out = w_gen.shape
    assert C_in == C_emb + C_ctx
    N = B * H * W

    # --- algebraic fold: embedding gather + cond@w_cond  ==  onehot @ (emb@w_cond)
    table = jnp.dot(emb_vis.astype(jnp.float32),
                    w_gen[:C_emb].astype(jnp.float32))           # [K, C_out] f32
    w_ctx = w_gen[C_emb:].astype(jnp.float32)                    # [C_ctx, C_out]

    # --- lane-dense output: pad C_out up to a multiple of 128 lanes
    C_pad = _round_up(C_out, 128)
    if C_pad != C_out:
        pad = C_pad - C_out
        table = jnp.pad(table, ((0, 0), (0, pad)))
        w_ctx = jnp.pad(w_ctx, ((0, 0), (0, pad)))
        bias = jnp.pad(b_gen.astype(jnp.float32), (0, pad))
    else:
        bias = b_gen.astype(jnp.float32)
    bias = bias.reshape(1, C_pad)

    # bf16 MXU operands (f32 accumulation in-kernel); halves the dominant ctx stream.
    table = table.astype(compute_dtype)
    w_ctx = w_ctx.astype(compute_dtype)

    gt_flat = gt.reshape(N, 1).astype(jnp.int32)
    ctx_flat = contextual_nhwc.reshape(N, C_ctx).astype(compute_dtype)

    # --- tile the pixel axis; pad N so the last tile is full (padded rows use
    #     ignore_index -> zero condition, and are sliced off below).
    tm = min(tm, _round_up(N, 8))
    N_pad = _round_up(N, tm)
    if N_pad != N:
        gt_flat = jnp.pad(gt_flat, ((0, N_pad - N), (0, 0)),
                          constant_values=ignore_index)
        ctx_flat = jnp.pad(ctx_flat, ((0, N_pad - N), (0, 0)))
    grid = (N_pad // tm,)   # keep >= 8-16 steps at real resolutions so v7x's 2 TCs stay fed

    elt = jnp.dtype(compute_dtype).itemsize
    bytes_accessed = (gt_flat.size * 4 + ctx_flat.size * elt
                      + table.size * elt + w_ctx.size * elt + bias.size * 4
                      + N_pad * C_pad * 4)
    flops = 2 * N_pad * (K + C_ctx) * C_pad
    cost = pl.CostEstimate(flops=flops, transcendentals=0,
                           bytes_accessed=bytes_accessed)

    kernel = functools.partial(_gen_fused_kernel, compute_dtype=compute_dtype)

    out_flat = pl.pallas_call(
        kernel,
        out_shape=jax.ShapeDtypeStruct((N_pad, C_pad), jnp.float32),
        grid_spec=pltpu.PrefetchScalarGridSpec(
            num_scalar_prefetch=0,
            grid=grid,
            in_specs=[
                pl.BlockSpec((tm, 1), lambda i: (i, 0)),          # gt ids
                pl.BlockSpec((tm, C_ctx), lambda i: (i, 0)),      # contextual (bf16)
                pl.BlockSpec((K, C_pad), lambda i: (0, 0)),       # folded emb@w_cond table (resident)
                pl.BlockSpec((C_ctx, C_pad), lambda i: (0, 0)),   # gen weight, ctx half (resident)
                pl.BlockSpec((1, C_pad), lambda i: (0, 0)),       # gen bias (resident)
            ],
            out_specs=pl.BlockSpec((tm, C_pad), lambda i: (i, 0)),
        ),
        compiler_params=pltpu.CompilerParams(
            dimension_semantics=("parallel",)),
        cost_estimate=cost,
    )(gt_flat, ctx_flat, table, w_ctx, bias)

    predict = out_flat[:N, :C_out].reshape(B, H, W, C_out)
    ignore_mask = (gt != ignore_index)                            # plain-JAX glue
    return predict, ignore_mask


def our_model_step1_nchw(gt, contextual_nchw, emb_vis, w_gen, b_gen, **kw):
    """PyTorch-convention adapter (NCHW in / NCHW out).

    NOTE: the two transposes here roughly double end-to-end HBM traffic for this
    memory-bound kernel; prefer the NHWC entry point when the producer/consumer
    can use channels-last.
    """
    ctx_nhwc = jnp.transpose(contextual_nchw, (0, 2, 3, 1))
    predict_nhwc, ignore_mask = our_model_step1(gt, ctx_nhwc, emb_vis, w_gen,
                                                b_gen, **kw)
    return jnp.transpose(predict_nhwc, (0, 3, 1, 2)), ignore_mask


if __name__ == "__main__":
    # Small, deterministic synthetic configuration.
    B, H, W = 2, 16, 16          # target feature-map resolution
    K = 16                       # number of visible classes (Em_vis rows)
    C_EMB = 32                   # class embedding dim
    C_CTX = 32                   # backbone contextual channels
    C_OUT = 64                   # generator output feature dim (padded to 128 internally)
    IGNORE_INDEX = 255

    key = jax.random.PRNGKey(0)
    k_gt, k_ctx, k_emb, k_w, k_b = jax.random.split(key, 5)

    gt = jax.random.randint(k_gt, (B, H, W), 0, K, dtype=jnp.int32)
    contextual_nhwc = jax.random.normal(k_ctx, (B, H, W, C_CTX), dtype=jnp.float32)

    # Deterministic "pretrained" parameters (synthetic).
    emb_vis = jax.random.normal(k_emb, (K, C_EMB), dtype=jnp.float32) * 0.1
    w_gen = jax.random.normal(k_w, (C_EMB + C_CTX, C_OUT), dtype=jnp.float32) * 0.05
    b_gen = jax.random.normal(k_b, (C_OUT,), dtype=jnp.float32) * 0.01

    # Fast channels-last path.
    predict, ignore_mask = our_model_step1(
        gt, contextual_nhwc, emb_vis, w_gen, b_gen, ignore_index=IGNORE_INDEX)
    jax.block_until_ready((predict, ignore_mask))

    # PyTorch-convention (NCHW) adapter, exercised once for parity.
    contextual_nchw = jnp.transpose(contextual_nhwc, (0, 3, 1, 2))
    predict_nchw, _ = our_model_step1_nchw(
        gt, contextual_nchw, emb_vis, w_gen, b_gen, ignore_index=IGNORE_INDEX)
    jax.block_until_ready(predict_nchw)

    # Reference in plain JAX (embedding gather + channel concat + 1x1 conv + LeakyReLU),
    # matching the PyTorch forward's math, expressed channels-last.
    cond_ref = emb_vis[gt]                                               # [B,H,W,C_emb]
    sample_ref = jnp.concatenate([cond_ref, contextual_nhwc], axis=-1)   # cat along channels
    y_ref = jnp.einsum('bhwc,co->bhwo', sample_ref, w_gen) + b_gen
    pred_ref = jnp.where(y_ref > 0, y_ref, 0.2 * y_ref)

    # Tolerance loosened for bf16 MXU operands (f32 accumulation).
    assert predict.shape == (B, H, W, C_OUT)
    assert jnp.allclose(predict, pred_ref, atol=2e-2, rtol=2e-2)
    assert predict_nchw.shape == (B, C_OUT, H, W)
    assert jnp.allclose(predict_nchw, jnp.transpose(pred_ref, (0, 3, 1, 2)),
                        atol=2e-2, rtol=2e-2)
    assert bool(jnp.all(ignore_mask == (gt != IGNORE_INDEX)))

    print("KERNEL_OK")
</pallas_src>

<mosaic_0001>
module attributes {stable_mosaic.version = 11 : i64} {
  func.func @_gen_fused_kernel(%arg0: i32, %arg1: memref<512x1xi32, #tpu.memory_space<vmem>>, %arg2: memref<512x32xbf16, #tpu.memory_space<vmem>>, %arg3: memref<16x128xbf16, #tpu.memory_space<vmem>>, %arg4: memref<32x128xbf16, #tpu.memory_space<vmem>>, %arg5: memref<1x128xf32, #tpu.memory_space<vmem>>, %arg6: memref<512x128xf32, #tpu.memory_space<vmem>>) attributes {dimension_semantics = [#tpu.dimension_semantics<parallel>], iteration_bounds = array<i64: 1>, scalar_prefetch = 0 : i64, scratch_operands = 0 : i64, tpu.core_type = #tpu.core_type<tc>, window_params = [{transform_indices = @transform_0, window_bounds = array<i64: 512, 1>}, {transform_indices = @transform_1, window_bounds = array<i64: 512, 32>}, {pipeline_mode = #tpu.pipeline_mode<synchronous>, transform_indices = @transform_2, window_bounds = array<i64: 16, 128>}, {pipeline_mode = #tpu.pipeline_mode<synchronous>, transform_indices = @transform_3, window_bounds = array<i64: 32, 128>}, {pipeline_mode = #tpu.pipeline_mode<synchronous>, transform_indices = @transform_4, window_bounds = array<i64: 1, 128>}, {transform_indices = @transform_5, window_bounds = array<i64: 512, 128>}]} {
    %c0 = arith.constant 0 : index
    %c0_0 = arith.constant 0 : index
    %0 = vector.load %arg1[%c0, %c0_0] : memref<512x1xi32, #tpu.memory_space<vmem>>, vector<512x1xi32>
    %1 = tpu.iota {dimensions = array<i32: 1>} : vector<1x16xi32>
    %2 = vector.broadcast %0 : vector<512x1xi32> to vector<512x16xi32>
    %3 = vector.broadcast %1 : vector<1x16xi32> to vector<512x16xi32>
    %4 = arith.cmpi eq, %2, %3 : vector<512x16xi32>
    %5 = arith.extui %4 : vector<512x16xi1> to vector<512x16xi32>
    %6 = arith.sitofp %5 : vector<512x16xi32> to vector<512x16xf32>
    %7 = arith.truncf %6 : vector<512x16xf32> to vector<512x16xbf16>
    %c0_1 = arith.constant 0 : index
    %c0_2 = arith.constant 0 : index
    %8 = vector.load %arg3[%c0_1, %c0_2] : memref<16x128xbf16, #tpu.memory_space<vmem>>, vector<16x128xbf16>
    %cst = arith.constant dense<0.000000e+00> : vector<512x128xf32>
    %9 = tpu.matmul %7, %8, %cst {dimension_numbers = #tpu.dot_dimension_numbers<[1], [0], [0], [1], [0, 0, 1, 1], [], []>} : vector<512x16xbf16>, vector<16x128xbf16>, vector<512x128xf32> -> vector<512x128xf32>
    %c0_3 = arith.constant 0 : index
    %c0_4 = arith.constant 0 : index
    %10 = vector.load %arg2[%c0_3, %c0_4] : memref<512x32xbf16, #tpu.memory_space<vmem>>, vector<512x32xbf16>
    %c0_5 = arith.constant 0 : index
    %c0_6 = arith.constant 0 : index
    %11 = vector.load %arg4[%c0_5, %c0_6] : memref<32x128xbf16, #tpu.memory_space<vmem>>, vector<32x128xbf16>
    %cst_7 = arith.constant dense<0.000000e+00> : vector<512x128xf32>
    %12 = tpu.matmul %10, %11, %cst_7 {dimension_numbers = #tpu.dot_dimension_numbers<[1], [0], [0], [1], [0, 0, 1, 1], [], []>} : vector<512x32xbf16>, vector<32x128xbf16>, vector<512x128xf32> -> vector<512x128xf32>
    %13 = arith.addf %9, %12 : vector<512x128xf32>
    %c0_8 = arith.constant 0 : index
    %c0_9 = arith.constant 0 : index
    %14 = vector.load %arg5[%c0_8, %c0_9] : memref<1x128xf32, #tpu.memory_space<vmem>>, vector<1x128xf32>
    %15 = vector.broadcast %14 : vector<1x128xf32> to vector<512x128xf32>
    %16 = arith.addf %13, %15 : vector<512x128xf32>
    %cst_10 = arith.constant 0.000000e+00 : f32
    %17 = vector.broadcast %cst_10 : f32 to vector<512x128xf32>
    %18 = arith.cmpf ogt, %16, %17 : vector<512x128xf32>
    %cst_11 = arith.constant 2.000000e-01 : f32
    %19 = vector.broadcast %cst_11 : f32 to vector<512x128xf32>
    %20 = arith.mulf %19, %16 : vector<512x128xf32>
    %21 = arith.select %18, %16, %20 : vector<512x128xi1>, vector<512x128xf32>
    %c0_12 = arith.constant 0 : index
    %c0_13 = arith.constant 0 : index
    %22 = vector.load %arg6[%c0_12, %c0_13] : memref<512x128xf32, #tpu.memory_space<vmem>>, vector<512x128xf32>
    tpu.vector_store %arg6[%c0_12, %c0_13], %21 {strides = array<i32>} : memref<512x128xf32, #tpu.memory_space<vmem>>, vector<512x128xf32>,
    return
  }
  func.func @transform_0(%arg0: i32) -> (i32, i32) {
    %c0_i32 = arith.constant 0 : i32
    %c0_i32_0 = arith.constant 0 : i32
    return %arg0, %c0_i32 : i32, i32
  }
  func.func @transform_1(%arg0: i32) -> (i32, i32) {
    %c0_i32 = arith.constant 0 : i32
    %c0_i32_0 = arith.constant 0 : i32
    return %arg0, %c0_i32 : i32, i32
  }
  func.func @transform_2(%arg0: i32) -> (i32, i32) {
    %c0_i32 = arith.constant 0 : i32
    %c0_i32_0 = arith.constant 0 : i32
    %c0_i32_1 = arith.constant 0 : i32
    return %c0_i32, %c0_i32_0 : i32, i32
  }
  func.func @transform_3(%arg0: i32) -> (i32, i32) {
    %c0_i32 = arith.constant 0 : i32
    %c0_i32_0 = arith.constant 0 : i32
    %c0_i32_1 = arith.constant 0 : i32
    return %c0_i32, %c0_i32_0 : i32, i32
  }
  func.func @transform_4(%arg0: i32) -> (i32, i32) {
    %c0_i32 = arith.constant 0 : i32
    %c0_i32_0 = arith.constant 0 : i32
    %c0_i32_1 = arith.constant 0 : i32
    return %c0_i32, %c0_i32_0 : i32, i32
  }
  func.func @transform_5(%arg0: i32) -> (i32, i32) {
    %c0_i32 = arith.constant 0 : i32
    %c0_i32_0 = arith.constant 0 : i32
    return %arg0, %c0_i32 : i32, i32
  }
}

</mosaic_0001>

<llo_original>
// kernel: tpu_custom_call.1
$region0: #{tpu_custom_call.1}
  #allocation0 [shape = 'u32[]', space=smem, size = 0x4, offset = 0x4, fixed_abs, tag = 'smem constant byte address 0x4 - core index']
  #allocation1 [shape = 'u32[72,128]{1,0:T(1,128)}', space=vmem, size = 0x9000, scoped, tag = 'internal scratch']
  %s0 = inlined_call_operand.vmem [shape: s32[512,1], index: 0, kind: input, shape index: {}]
  %s1 = inlined_call_operand.vmem [shape: bf16[512,32], index: 1, kind: input, shape index: {}]
  %s2 = inlined_call_operand.vmem [shape: bf16[16,128], index: 2, kind: input, shape index: {}]
  %s3 = inlined_call_operand.vmem [shape: bf16[32,128], index: 3, kind: input, shape index: {}]
  %s4 = inlined_call_operand.vmem [shape: f32[1,128], index: 4, kind: input, shape index: {}]
  %s5 = inlined_call_operand.hbm [shape: f32[512,128], index: 5, kind: output, shape index: {}]
  %s6 = sld [smem:[#allocation0]]
  $region30: #{tpu_custom_call.1} parent=0
    _
  %s8 = ssub.s32 1, %s6
  %s9 = scalar_select 0, %s8, %s6
  $region1: #{tpu_custom_call.1} parent=0
    #allocation2 [shape = 'u8[262144]{0}', space=vmem, size = 0x40000, scoped, tag = 'output window, operand 0, single buffered']
    #allocation3 [shape = 's32[1]{0}', space=sflag, size = 0x4, scoped, tag = 'scoped memory for tpu_custom_call.1']
    %10 = vsyncpa [#allocation3], 0
    // Predicated region
    $region2: #{tpu_custom_call.1} parent=1 // pred_check
      _
    $region3: #{tpu_custom_call.1} parent=1 // pred_check_branch
      %12 = sbr.rel (0) target = $region5
    $region4: #{tpu_custom_call.1} parent=1 // pred_region
      _
    $region5: #{tpu_custom_call.1} parent=1 // pred_fallthru
      _
    // Predicated region
    $region6: #{tpu_custom_call.1} parent=1 // pred_check
      _
    $region7: #{tpu_custom_call.1} parent=1 // pred_check_branch
      %14 = sbr.rel (0) target = $region9
    $region8: #{tpu_custom_call.1} parent=1 // pred_region
      _
    $region9: #{tpu_custom_call.1} parent=1 // pred_fallthru
      _
    // Predicated region
    $region10: #{tpu_custom_call.1} parent=1 // pred_check
      _
    $region11: #{tpu_custom_call.1} parent=1 // pred_check_branch
      %16 = sbr.rel (0) target = $region13
    $region12: #{tpu_custom_call.1} parent=1 // pred_region
      _
    $region13: #{tpu_custom_call.1} parent=1 // pred_fallthru
      _
    // Predicated region
    $region14: #{tpu_custom_call.1} parent=1 // pred_check
      _
    $region15: #{tpu_custom_call.1} parent=1 // pred_check_branch
      %18 = sbr.rel (0) target = $region17
    $region16: #{tpu_custom_call.1} parent=1 // pred_region
      _
    $region17: #{tpu_custom_call.1} parent=1 // pred_fallthru
      _
    // Predicated region
    $region18: #{tpu_custom_call.1} parent=1 // pred_check
      _
    $region19: #{tpu_custom_call.1} parent=1 // pred_check_branch
      %20 = sbr.rel (0) target = $region21
    $region20: #{tpu_custom_call.1} parent=1 // pred_region
      _
    $region21: #{tpu_custom_call.1} parent=1 // pred_fallthru
      _
    %v22 = vld [vmem:[%s0] sm:$0xff]
    %v23 = vld [vmem:[%s0 + $0x8] sm:$0xff]
    %v24 = vld [vmem:[%s0 + $0x10] sm:$0xff]
    %v25 = vld [vmem:[%s0 + $0x18] sm:$0xff]
    %v26 = vld [vmem:[%s0 + $0x20] sm:$0xff]
    %v27 = vld [vmem:[%s0 + $0x28] sm:$0xff]
    %v28 = vld [vmem:[%s0 + $0x30] sm:$0xff]
    %v29 = vld [vmem:[%s0 + $0x38] sm:$0xff]
    %v30 = vld [vmem:[%s0 + $0x40] sm:$0xff]
    %v31 = vld [vmem:[%s0 + $0x48] sm:$0xff]
    %v32 = vld [vmem:[%s0 + $0x50] sm:$0xff]
    %v33 = vld [vmem:[%s0 + $0x58] sm:$0xff]
    %v34 = vld [vmem:[%s0 + $0x60] sm:$0xff]
    %v35 = vld [vmem:[%s0 + $0x68] sm:$0xff]
    %v36 = vld [vmem:[%s0 + $0x70] sm:$0xff]
    %v37 = vld [vmem:[%s0 + $0x78] sm:$0xff]
    %v38 = vld [vmem:[%s0 + $0x80] sm:$0xff]
    %v39 = vld [vmem:[%s0 + $0x88] sm:$0xff]
    %v40 = vld [vmem:[%s0 + $0x90] sm:$0xff]
    %v41 = vld [vmem:[%s0 + $0x98] sm:$0xff]
    %v42 = vld [vmem:[%s0 + $0xa0] sm:$0xff]
    %v43 = vld [vmem:[%s0 + $0xa8] sm:$0xff]
    %v44 = vld [vmem:[%s0 + $0xb0] sm:$0xff]
    %v45 = vld [vmem:[%s0 + $0xb8] sm:$0xff]
    %v46 = vld [vmem:[%s0 + $0xc0] sm:$0xff]
    %v47 = vld [vmem:[%s0 + $0xc8] sm:$0xff]
    %v48 = vld [vmem:[%s0 + $0xd0] sm:$0xff]
    %v49 = vld [vmem:[%s0 + $0xd8] sm:$0xff]
    %v50 = vld [vmem:[%s0 + $0xe0] sm:$0xff]
    %v51 = vld [vmem:[%s0 + $0xe8] sm:$0xff]
    %v52 = vld [vmem:[%s0 + $0xf0] sm:$0xff]
    %v53 = vld [vmem:[%s0 + $0xf8] sm:$0xff]
    %v54 = vld [vmem:[%s0 + $0x100] sm:$0xff]
    %v55 = vld [vmem:[%s0 + $0x108] sm:$0xff]
    %v56 = vld [vmem:[%s0 + $0x110] sm:$0xff]
    %v57 = vld [vmem:[%s0 + $0x118] sm:$0xff]
    %v58 = vld [vmem:[%s0 + $0x120] sm:$0xff]
    %v59 = vld [vmem:[%s0 + $0x128] sm:$0xff]
    %v60 = vld [vmem:[%s0 + $0x130] sm:$0xff]
    %v61 = vld [vmem:[%s0 + $0x138] sm:$0xff]
    %v62 = vld [vmem:[%s0 + $0x140] sm:$0xff]
    %v63 = vld [vmem:[%s0 + $0x148] sm:$0xff]
    %v64 = vld [vmem:[%s0 + $0x150] sm:$0xff]
    %v65 = vld [vmem:[%s0 + $0x158] sm:$0xff]
    %v66 = vld [vmem:[%s0 + $0x160] sm:$0xff]
    %v67 = vld [vmem:[%s0 + $0x168] sm:$0xff]
    %v68 = vld [vmem:[%s0 + $0x170] sm:$0xff]
    %v69 = vld [vmem:[%s0 + $0x178] sm:$0xff]
    %v70 = vld [vmem:[%s0 + $0x180] sm:$0xff]
    %v71 = vld [vmem:[%s0 + $0x188] sm:$0xff]
    %v72 = vld [vmem:[%s0 + $0x190] sm:$0xff]
    %v73 = vld [vmem:[%s0 + $0x198] sm:$0xff]
    %v74 = vld [vmem:[%s0 + $0x1a0] sm:$0xff]
    %v75 = vld [vmem:[%s0 + $0x1a8] sm:$0xff]
    %v76 = vld [vmem:[%s0 + $0x1b0] sm:$0xff]
    %v77 = vld [vmem:[%s0 + $0x1b8] sm:$0xff]
    %v78 = vld [vmem:[%s0 + $0x1c0] sm:$0xff]
    %v79 = vld [vmem:[%s0 + $0x1c8] sm:$0xff]
    %v80 = vld [vmem:[%s0 + $0x1d0] sm:$0xff]
    %v81 = vld [vmem:[%s0 + $0x1d8] sm:$0xff]
    %v82 = vld [vmem:[%s0 + $0x1e0] sm:$0xff]
    %v83 = vld [vmem:[%s0 + $0x1e8] sm:$0xff]
    %v84 = vld [vmem:[%s0 + $0x1f0] sm:$0xff]
    %v85 = vld [vmem:[%s0 + $0x1f8] sm:$0xff]
    %v86 = vlaneseq
    %v87 = vand.u32 %v86, 127
    %88 = vset.pattern.permute.xlu0 0
    %89 = vperm.xlu0 %88, %v22
    %v90 = vpop.permute.xlu0 %89
    %91 = vset.pattern.permute.xlu0 0
    %92 = vperm.xlu0 %91, %v23
    %v93 = vpop.permute.xlu0 %92
    %94 = vset.pattern.permute.xlu0 0
    %95 = vperm.xlu0 %94, %v24
    %v96 = vpop.permute.xlu0 %95
    %97 = vset.pattern.permute.xlu0 0
    %98 = vperm.xlu0 %97, %v25
    %v99 = vpop.permute.xlu0 %98
    %100 = vset.pattern.permute.xlu0 0
    %101 = vperm.xlu0 %100, %v26
    %v102 = vpop.permute.xlu0 %101
    %103 = vset.pattern.permute.xlu0 0
    %104 = vperm.xlu0 %103, %v27
    %v105 = vpop.permute.xlu0 %104
    %106 = vset.pattern.permute.xlu0 0
    %107 = vperm.xlu0 %106, %v28
    %v108 = vpop.permute.xlu0 %107
    %109 = vset.pattern.permute.xlu0 0
    %110 = vperm.xlu0 %109, %v29
    %v111 = vpop.permute.xlu0 %110
    %112 = vset.pattern.permute.xlu0 0
    %113 = vperm.xlu0 %112, %v30
    %v114 = vpop.permute.xlu0 %113
    %115 = vset.pattern.permute.xlu0 0
    %116 = vperm.xlu0 %115, %v31
    %v117 = vpop.permute.xlu0 %116
    %118 = vset.pattern.permute.xlu0 0
    %119 = vperm.xlu0 %118, %v32
    %v120 = vpop.permute.xlu0 %119
    %121 = vset.pattern.permute.xlu0 0
    %122 = vperm.xlu0 %121, %v33
    %v123 = vpop.permute.xlu0 %122
    %124 = vset.pattern.permute.xlu0 0
    %125 = vperm.xlu0 %124, %v34
    %v126 = vpop.permute.xlu0 %125
    %127 = vset.pattern.permute.xlu0 0
    %128 = vperm.xlu0 %127, %v35
    %v129 = vpop.permute.xlu0 %128
    %130 = vset.pattern.permute.xlu0 0
    %131 = vperm.xlu0 %130, %v36
    %v132 = vpop.permute.xlu0 %131
    %133 = vset.pattern.permute.xlu0 0
    %134 = vperm.xlu0 %133, %v37
    %v135 = vpop.permute.xlu0 %134
    %136 = vset.pattern.permute.xlu0 0
    %137 = vperm.xlu0 %136, %v38
    %v138 = vpop.permute.xlu0 %137
    %139 = vset.pattern.permute.xlu0 0
    %140 = vperm.xlu0 %139, %v39
    %v141 = vpop.permute.xlu0 %140
    %142 = vset.pattern.permute.xlu0 0
    %143 = vperm.xlu0 %142, %v40
    %v144 = vpop.permute.xlu0 %143
    %145 = vset.pattern.permute.xlu0 0
    %146 = vperm.xlu0 %145, %v41
    %v147 = vpop.permute.xlu0 %146
    %148 = vset.pattern.permute.xlu0 0
    %149 = vperm.xlu0 %148, %v42
    %v150 = vpop.permute.xlu0 %149
    %151 = vset.pattern.permute.xlu0 0
    %152 = vperm.xlu0 %151, %v43
    %v153 = vpop.permute.xlu0 %152
    %154 = vset.pattern.permute.xlu0 0
    %155 = vperm.xlu0 %154, %v44
    %v156 = vpop.permute.xlu0 %155
    %157 = vset.pattern.permute.xlu0 0
    %158 = vperm.xlu0 %157, %v45
    %v159 = vpop.permute.xlu0 %158
    %160 = vset.pattern.permute.xlu0 0
    %161 = vperm.xlu0 %160, %v46
    %v162 = vpop.permute.xlu0 %161
    %163 = vset.pattern.permute.xlu0 0
    %164 = vperm.xlu0 %163, %v47
    %v165 = vpop.permute.xlu0 %164
    %166 = vset.pattern.permute.xlu0 0
    %167 = vperm.xlu0 %166, %v48
    %v168 = vpop.permute.xlu0 %167
    %169 = vset.pattern.permute.xlu0 0
    %170 = vperm.xlu0 %169, %v49
    %v171 = vpop.permute.xlu0 %170
    %172 = vset.pattern.permute.xlu0 0
    %173 = vperm.xlu0 %172, %v50
    %v174 = vpop.permute.xlu0 %173
    %175 = vset.pattern.permute.xlu0 0
    %176 = vperm.xlu0 %175, %v51
    %v177 = vpop.permute.xlu0 %176
    %178 = vset.pattern.permute.xlu0 0
    %179 = vperm.xlu0 %178, %v52
    %v180 = vpop.permute.xlu0 %179
    %181 = vset.pattern.permute.xlu0 0
    %182 = vperm.xlu0 %181, %v53
    %v183 = vpop.permute.xlu0 %182
    %184 = vset.pattern.permute.xlu0 0
    %185 = vperm.xlu0 %184, %v54
    %v186 = vpop.permute.xlu0 %185
    %187 = vset.pattern.permute.xlu0 0
    %188 = vperm.xlu0 %187, %v55
    %v189 = vpop.permute.xlu0 %188
    %190 = vset.pattern.permute.xlu0 0
    %191 = vperm.xlu0 %190, %v56
    %v192 = vpop.permute.xlu0 %191
    %193 = vset.pattern.permute.xlu0 0
    %194 = vperm.xlu0 %193, %v57
    %v195 = vpop.permute.xlu0 %194
    %196 = vset.pattern.permute.xlu0 0
    %197 = vperm.xlu0 %196, %v58
    %v198 = vpop.permute.xlu0 %197
    %199 = vset.pattern.permute.xlu0 0
    %200 = vperm.xlu0 %199, %v59
    %v201 = vpop.permute.xlu0 %200
    %202 = vset.pattern.permute.xlu0 0
    %203 = vperm.xlu0 %202, %v60
    %v204 = vpop.permute.xlu0 %203
    %205 = vset.pattern.permute.xlu0 0
    %206 = vperm.xlu0 %205, %v61
    %v207 = vpop.permute.xlu0 %206
    %208 = vset.pattern.permute.xlu0 0
    %209 = vperm.xlu0 %208, %v62
    %v210 = vpop.permute.xlu0 %209
    %211 = vset.pattern.permute.xlu0 0
    %212 = vperm.xlu0 %211, %v63
    %v213 = vpop.permute.xlu0 %212
    %214 = vset.pattern.permute.xlu0 0
    %215 = vperm.xlu0 %214, %v64
    %v216 = vpop.permute.xlu0 %215
    %217 = vset.pattern.permute.xlu0 0
    %218 = vperm.xlu0 %217, %v65
    %v219 = vpop.permute.xlu0 %218
    %220 = vset.pattern.permute.xlu0 0
    %221 = vperm.xlu0 %220, %v66
    %v222 = vpop.permute.xlu0 %221
    %223 = vset.pattern.permute.xlu0 0
    %224 = vperm.xlu0 %223, %v67
    %v225 = vpop.permute.xlu0 %224
    %226 = vset.pattern.permute.xlu0 0
    %227 = vperm.xlu0 %226, %v68
    %v228 = vpop.permute.xlu0 %227
    %229 = vset.pattern.permute.xlu0 0
    %230 = vperm.xlu0 %229, %v69
    %v231 = vpop.permute.xlu0 %230
    %232 = vset.pattern.permute.xlu0 0
    %233 = vperm.xlu0 %232, %v70
    %v234 = vpop.permute.xlu0 %233
    %235 = vset.pattern.permute.xlu0 0
    %236 = vperm.xlu0 %235, %v71
    %v237 = vpop.permute.xlu0 %236
    %238 = vset.pattern.permute.xlu0 0
    %239 = vperm.xlu0 %238, %v72
    %v240 = vpop.permute.xlu0 %239
    %241 = vset.pattern.permute.xlu0 0
    %242 = vperm.xlu0 %241, %v73
    %v243 = vpop.permute.xlu0 %242
    %244 = vset.pattern.permute.xlu0 0
    %245 = vperm.xlu0 %244, %v74
    %v246 = vpop.permute.xlu0 %245
    %247 = vset.pattern.permute.xlu0 0
    %248 = vperm.xlu0 %247, %v75
    %v249 = vpop.permute.xlu0 %248
    %250 = vset.pattern.permute.xlu0 0
    %251 = vperm.xlu0 %250, %v76
    %v252 = vpop.permute.xlu0 %251
    %253 = vset.pattern.permute.xlu0 0
    %254 = vperm.xlu0 %253, %v77
    %v255 = vpop.permute.xlu0 %254
    %256 = vset.pattern.permute.xlu0 0
    %257 = vperm.xlu0 %256, %v78
    %v258 = vpop.permute.xlu0 %257
    %259 = vset.pattern.permute.xlu0 0
    %260 = vperm.xlu0 %259, %v79
    %v261 = vpop.permute.xlu0 %260
    %262 = vset.pattern.permute.xlu0 0
    %263 = vperm.xlu0 %262, %v80
    %v264 = vpop.permute.xlu0 %263
    %265 = vset.pattern.permute.xlu0 0
    %266 = vperm.xlu0 %265, %v81
    %v267 = vpop.permute.xlu0 %266
    %268 = vset.pattern.permute.xlu0 0
    %269 = vperm.xlu0 %268, %v82
    %v270 = vpop.permute.xlu0 %269
    %271 = vset.pattern.permute.xlu0 0
    %272 = vperm.xlu0 %271, %v83
    %v273 = vpop.permute.xlu0 %272
    %274 = vset.pattern.permute.xlu0 0
    %275 = vperm.xlu0 %274, %v84
    %v276 = vpop.permute.xlu0 %275
    %277 = vset.pattern.permute.xlu0 0
    %278 = vperm.xlu0 %277, %v85
    %v279 = vpop.permute.xlu0 %278
    %vm280 = vcmp.eq.s32.totalorder %v90, %v87
    %vm281 = vcmp.eq.s32.totalorder %v93, %v87
    %vm282 = vcmp.eq.s32.totalorder %v96, %v87
    %vm283 = vcmp.eq.s32.totalorder %v99, %v87
    %vm284 = vcmp.eq.s32.totalorder %v102, %v87
    %vm285 = vcmp.eq.s32.totalorder %v105, %v87
    %vm286 = vcmp.eq.s32.totalorder %v108, %v87
    %vm287 = vcmp.eq.s32.totalorder %v111, %v87
    %vm288 = vcmp.eq.s32.totalorder %v114, %v87
    %vm289 = vcmp.eq.s32.totalorder %v117, %v87
    %vm290 = vcmp.eq.s32.totalorder %v120, %v87
    %vm291 = vcmp.eq.s32.totalorder %v123, %v87
    %vm292 = vcmp.eq.s32.totalorder %v126, %v87
    %vm293 = vcmp.eq.s32.totalorder %v129, %v87
    %vm294 = vcmp.eq.s32.totalorder %v132, %v87
    %vm295 = vcmp.eq.s32.totalorder %v135, %v87
    %vm296 = vcmp.eq.s32.totalorder %v138, %v87
    %vm297 = vcmp.eq.s32.totalorder %v141, %v87
    %vm298 = vcmp.eq.s32.totalorder %v144, %v87
    %vm299 = vcmp.eq.s32.totalorder %v147, %v87
    %vm300 = vcmp.eq.s32.totalorder %v150, %v87
    %vm301 = vcmp.eq.s32.totalorder %v153, %v87
    %vm302 = vcmp.eq.s32.totalorder %v156, %v87
    %vm303 = vcmp.eq.s32.totalorder %v159, %v87
    %vm304 = vcmp.eq.s32.totalorder %v162, %v87
    %vm305 = vcmp.eq.s32.totalorder %v165, %v87
    %vm306 = vcmp.eq.s32.totalorder %v168, %v87
    %vm307 = vcmp.eq.s32.totalorder %v171, %v87
    %vm308 = vcmp.eq.s32.totalorder %v174, %v87
    %vm309 = vcmp.eq.s32.totalorder %v177, %v87
    %vm310 = vcmp.eq.s32.totalorder %v180, %v87
    %vm311 = vcmp.eq.s32.totalorder %v183, %v87
    %vm312 = vcmp.eq.s32.totalorder %v186, %v87
    %vm313 = vcmp.eq.s32.totalorder %v189, %v87
    %vm314 = vcmp.eq.s32.totalorder %v192, %v87
    %vm315 = vcmp.eq.s32.totalorder %v195, %v87
    %vm316 = vcmp.eq.s32.totalorder %v198, %v87
    %vm317 = vcmp.eq.s32.totalorder %v201, %v87
    %vm318 = vcmp.eq.s32.totalorder %v204, %v87
    %vm319 = vcmp.eq.s32.totalorder %v207, %v87
    %vm320 = vcmp.eq.s32.totalorder %v210, %v87
    %vm321 = vcmp.eq.s32.totalorder %v213, %v87
    %vm322 = vcmp.eq.s32.totalorder %v216, %v87
    %vm323 = vcmp.eq.s32.totalorder %v219, %v87
    %vm324 = vcmp.eq.s32.totalorder %v222, %v87
    %vm325 = vcmp.eq.s32.totalorder %v225, %v87
    %vm326 = vcmp.eq.s32.totalorder %v228, %v87
    %vm327 = vcmp.eq.s32.totalorder %v231, %v87
    %vm328 = vcmp.eq.s32.totalorder %v234, %v87
    %vm329 = vcmp.eq.s32.totalorder %v237, %v87
    %vm330 = vcmp.eq.s32.totalorder %v240, %v87
    %vm331 = vcmp.eq.s32.totalorder %v243, %v87
    %vm332 = vcmp.eq.s32.totalorder %v246, %v87
    %vm333 = vcmp.eq.s32.totalorder %v249, %v87
    %vm334 = vcmp.eq.s32.totalorder %v252, %v87
    %vm335 = vcmp.eq.s32.totalorder %v255, %v87
    %vm336 = vcmp.eq.s32.totalorder %v258, %v87
    %vm337 = vcmp.eq.s32.totalorder %v261, %v87
    %vm338 = vcmp.eq.s32.totalorder %v264, %v87
    %vm339 = vcmp.eq.s32.totalorder %v267, %v87
    %vm340 = vcmp.eq.s32.totalorder %v270, %v87
    %vm341 = vcmp.eq.s32.totalorder %v273, %v87
    %vm342 = vcmp.eq.s32.totalorder %v276, %v87
    %vm343 = vcmp.eq.s32.totalorder %v279, %v87
    %v344 = vsel %vm280, 1, 0
    %v345 = vsel %vm281, 1, 0
    %v346 = vsel %vm282, 1, 0
    %v347 = vsel %vm283, 1, 0
    %v348 = vsel %vm284, 1, 0
    %v349 = vsel %vm285, 1, 0
    %v350 = vsel %vm286, 1, 0
    %v351 = vsel %vm287, 1, 0
    %v352 = vsel %vm288, 1, 0
    %v353 = vsel %vm289, 1, 0
    %v354 = vsel %vm290, 1, 0
    %v355 = vsel %vm291, 1, 0
    %v356 = vsel %vm292, 1, 0
    %v357 = vsel %vm293, 1, 0
    %v358 = vsel %vm294, 1, 0
    %v359 = vsel %vm295, 1, 0
    %v360 = vsel %vm296, 1, 0
    %v361 = vsel %vm297, 1, 0
    %v362 = vsel %vm298, 1, 0
    %v363 = vsel %vm299, 1, 0
    %v364 = vsel %vm300, 1, 0
    %v365 = vsel %vm301, 1, 0
    %v366 = vsel %vm302, 1, 0
    %v367 = vsel %vm303, 1, 0
    %v368 = vsel %vm304, 1, 0
    %v369 = vsel %vm305, 1, 0
    %v370 = vsel %vm306, 1, 0
    %v371 = vsel %vm307, 1, 0
    %v372 = vsel %vm308, 1, 0
    %v373 = vsel %vm309, 1, 0
    %v374 = vsel %vm310, 1, 0
    %v375 = vsel %vm311, 1, 0
    %v376 = vsel %vm312, 1, 0
    %v377 = vsel %vm313, 1, 0
    %v378 = vsel %vm314, 1, 0
    %v379 = vsel %vm315, 1, 0
    %v380 = vsel %vm316, 1, 0
    %v381 = vsel %vm317, 1, 0
    %v382 = vsel %vm318, 1, 0
    %v383 = vsel %vm319, 1, 0
    %v384 = vsel %vm320, 1, 0
    %v385 = vsel %vm321, 1, 0
    %v386 = vsel %vm322, 1, 0
    %v387 = vsel %vm323, 1, 0
    %v388 = vsel %vm324, 1, 0
    %v389 = vsel %vm325, 1, 0
    %v390 = vsel %vm326, 1, 0
    %v391 = vsel %vm327, 1, 0
    %v392 = vsel %vm328, 1, 0
    %v393 = vsel %vm329, 1, 0
    %v394 = vsel %vm330, 1, 0
    %v395 = vsel %vm331, 1, 0
    %v396 = vsel %vm332, 1, 0
    %v397 = vsel %vm333, 1, 0
    %v398 = vsel %vm334, 1, 0
    %v399 = vsel %vm335, 1, 0
    %v400 = vsel %vm336, 1, 0
    %v401 = vsel %vm337, 1, 0
    %v402 = vsel %vm338, 1, 0
    %v403 = vsel %vm339, 1, 0
    %v404 = vsel %vm340, 1, 0
    %v405 = vsel %vm341, 1, 0
    %v406 = vsel %vm342, 1, 0
    %v407 = vsel %vm343, 1, 0
    %v408 = vcvt.s32.f32 %v344
    %v409 = vcvt.s32.f32 %v345
    %v410 = vcvt.s32.f32 %v346
    %v411 = vcvt.s32.f32 %v347
    %v412 = vcvt.s32.f32 %v348
    %v413 = vcvt.s32.f32 %v349
    %v414 = vcvt.s32.f32 %v350
    %v415 = vcvt.s32.f32 %v351
    %v416 = vcvt.s32.f32 %v352
    %v417 = vcvt.s32.f32 %v353
    %v418 = vcvt.s32.f32 %v354
    %v419 = vcvt.s32.f32 %v355
    %v420 = vcvt.s32.f32 %v356
    %v421 = vcvt.s32.f32 %v357
    %v422 = vcvt.s32.f32 %v358
    %v423 = vcvt.s32.f32 %v359
    %v424 = vcvt.s32.f32 %v360
    %v425 = vcvt.s32.f32 %v361
    %v426 = vcvt.s32.f32 %v362
    %v427 = vcvt.s32.f32 %v363
    %v428 = vcvt.s32.f32 %v364
    %v429 = vcvt.s32.f32 %v365
    %v430 = vcvt.s32.f32 %v366
    %v431 = vcvt.s32.f32 %v367
    %v432 = vcvt.s32.f32 %v368
    %v433 = vcvt.s32.f32 %v369
    %v434 = vcvt.s32.f32 %v370
    %v435 = vcvt.s32.f32 %v371
    %v436 = vcvt.s32.f32 %v372
    %v437 = vcvt.s32.f32 %v373
    %v438 = vcvt.s32.f32 %v374
    %v439 = vcvt.s32.f32 %v375
    %v440 = vcvt.s32.f32 %v376
    %v441 = vcvt.s32.f32 %v377
    %v442 = vcvt.s32.f32 %v378
    %v443 = vcvt.s32.f32 %v379
    %v444 = vcvt.s32.f32 %v380
    %v445 = vcvt.s32.f32 %v381
    %v446 = vcvt.s32.f32 %v382
    %v447 = vcvt.s32.f32 %v383
    %v448 = vcvt.s32.f32 %v384
    %v449 = vcvt.s32.f32 %v385
    %v450 = vcvt.s32.f32 %v386
    %v451 = vcvt.s32.f32 %v387
    %v452 = vcvt.s32.f32 %v388
    %v453 = vcvt.s32.f32 %v389
    %v454 = vcvt.s32.f32 %v390
    %v455 = vcvt.s32.f32 %v391
    %v456 = vcvt.s32.f32 %v392
    %v457 = vcvt.s32.f32 %v393
    %v458 = vcvt.s32.f32 %v394
    %v459 = vcvt.s32.f32 %v395
    %v460 = vcvt.s32.f32 %v396
    %v461 = vcvt.s32.f32 %v397
    %v462 = vcvt.s32.f32 %v398
    %v463 = vcvt.s32.f32 %v399
    %v464 = vcvt.s32.f32 %v400
    %v465 = vcvt.s32.f32 %v401
    %v466 = vcvt.s32.f32 %v402
    %v467 = vcvt.s32.f32 %v403
    %v468 = vcvt.s32.f32 %v404
    %v469 = vcvt.s32.f32 %v405
    %v470 = vcvt.s32.f32 %v406
    %v471 = vcvt.s32.f32 %v407
    %v472 = vpack.c.bf16 %v409, %v408
    %v473 = vpack.c.bf16 %v411, %v410
    %v474 = vpack.c.bf16 %v413, %v412
    %v475 = vpack.c.bf16 %v415, %v414
    %v476 = vpack.c.bf16 %v417, %v416
    %v477 = vpack.c.bf16 %v419, %v418
    %v478 = vpack.c.bf16 %v421, %v420
    %v479 = vpack.c.bf16 %v423, %v422
    %v480 = vpack.c.bf16 %v425, %v424
    %v481 = vpack.c.bf16 %v427, %v426
    %v482 = vpack.c.bf16 %v429, %v428
    %v483 = vpack.c.bf16 %v431, %v430
    %v484 = vpack.c.bf16 %v433, %v432
    %v485 = vpack.c.bf16 %v435, %v434
    %v486 = vpack.c.bf16 %v437, %v436
    %v487 = vpack.c.bf16 %v439, %v438
    %v488 = vpack.c.bf16 %v441, %v440
    %v489 = vpack.c.bf16 %v443, %v442
    %v490 = vpack.c.bf16 %v445, %v444
    %v491 = vpack.c.bf16 %v447, %v446
    %v492 = vpack.c.bf16 %v449, %v448
    %v493 = vpack.c.bf16 %v451, %v450
    %v494 = vpack.c.bf16 %v453, %v452
    %v495 = vpack.c.bf16 %v455, %v454
    %v496 = vpack.c.bf16 %v457, %v456
    %v497 = vpack.c.bf16 %v459, %v458
    %v498 = vpack.c.bf16 %v461, %v460
    %v499 = vpack.c.bf16 %v463, %v462
    %v500 = vpack.c.bf16 %v465, %v464
    %v501 = vpack.c.bf16 %v467, %v466
    %v502 = vpack.c.bf16 %v469, %v468
    %v503 = vpack.c.bf16 %v471, %v470
    %v504 = vld [vmem:[%s2] sm:$0xf]
    %v505 = vld [vmem:[%s2 + $0x4] sm:$0xf]
    %v506 = vld [vmem:[%s1] sm:$0xf]
    %v507 = vld [vmem:[%s1 + $0x4] sm:$0xf]
    %v508 = vld [vmem:[%s1 + $0x8] sm:$0xf]
    %v509 = vld [vmem:[%s1 + $0xc] sm:$0xf]
    %v510 = vld [vmem:[%s1 + $0x10] sm:$0xf]
    %v511 = vld [vmem:[%s1 + $0x14] sm:$0xf]
    %v512 = vld [vmem:[%s1 + $0x18] sm:$0xf]
    %v513 = vld [vmem:[%s1 + $0x1c] sm:$0xf]
    %v514 = vld [vmem:[%s1 + $0x20] sm:$0xf]
    %v515 = vld [vmem:[%s1 + $0x24] sm:$0xf]
    %v516 = vld [vmem:[%s1 + $0x28] sm:$0xf]
    %v517 = vld [vmem:[%s1 + $0x2c] sm:$0xf]
    %v518 = vld [vmem:[%s1 + $0x30] sm:$0xf]
    %v519 = vld [vmem:[%s1 + $0x34] sm:$0xf]
    %v520 = vld [vmem:[%s1 + $0x38] sm:$0xf]
    %v521 = vld [vmem:[%s1 + $0x3c] sm:$0xf]
    %v522 = vld [vmem:[%s1 + $0x40] sm:$0xf]
    %v523 = vld [vmem:[%s1 + $0x44] sm:$0xf]
    %v524 = vld [vmem:[%s1 + $0x48] sm:$0xf]
    %v525 = vld [vmem:[%s1 + $0x4c] sm:$0xf]
    %v526 = vld [vmem:[%s1 + $0x50] sm:$0xf]
    %v527 = vld [vmem:[%s1 + $0x54] sm:$0xf]
    %v528 = vld [vmem:[%s1 + $0x58] sm:$0xf]
    %v529 = vld [vmem:[%s1 + $0x5c] sm:$0xf]
    %v530 = vld [vmem:[%s1 + $0x60] sm:$0xf]
    %v531 = vld [vmem:[%s1 + $0x64] sm:$0xf]
    %v532 = vld [vmem:[%s1 + $0x68] sm:$0xf]
    %v533 = vld [vmem:[%s1 + $0x6c] sm:$0xf]
    %v534 = vld [vmem:[%s1 + $0x70] sm:$0xf]
    %v535 = vld [vmem:[%s1 + $0x74] sm:$0xf]
    %v536 = vld [vmem:[%s1 + $0x78] sm:$0xf]
    %v537 = vld [vmem:[%s1 + $0x7c] sm:$0xf]
    %v538 = vld [vmem:[%s1 + $0x80] sm:$0xf]
    %v539 = vld [vmem:[%s1 + $0x84] sm:$0xf]
    %v540 = vld [vmem:[%s1 + $0x88] sm:$0xf]
    %v541 = vld [vmem:[%s1 + $0x8c] sm:$0xf]
    %v542 = vld [vmem:[%s1 + $0x90] sm:$0xf]
    %v543 = vld [vmem:[%s1 + $0x94] sm:$0xf]
    %v544 = vld [vmem:[%s1 + $0x98] sm:$0xf]
    %v545 = vld [vmem:[%s1 + $0x9c] sm:$0xf]
    %v546 = vld [vmem:[%s1 + $0xa0] sm:$0xf]
    %v547 = vld [vmem:[%s1 + $0xa4] sm:$0xf]
    %v548 = vld [vmem:[%s1 + $0xa8] sm:$0xf]
    %v549 = vld [vmem:[%s1 + $0xac] sm:$0xf]
    %v550 = vld [vmem:[%s1 + $0xb0] sm:$0xf]
    %v551 = vld [vmem:[%s1 + $0xb4] sm:$0xf]
    %v552 = vld [vmem:[%s1 + $0xb8] sm:$0xf]
    %v553 = vld [vmem:[%s1 + $0xbc] sm:$0xf]
    %v554 = vld [vmem:[%s1 + $0xc0] sm:$0xf]
    %v555 = vld [vmem:[%s1 + $0xc4] sm:$0xf]
    %v556 = vld [vmem:[%s1 + $0xc8] sm:$0xf]
    %v557 = vld [vmem:[%s1 + $0xcc] sm:$0xf]
    %v558 = vld [vmem:[%s1 + $0xd0] sm:$0xf]
    %v559 = vld [vmem:[%s1 + $0xd4] sm:$0xf]
    %v560 = vld [vmem:[%s1 + $0xd8] sm:$0xf]
    %v561 = vld [vmem:[%s1 + $0xdc] sm:$0xf]
    %v562 = vld [vmem:[%s1 + $0xe0] sm:$0xf]
    %v563 = vld [vmem:[%s1 + $0xe4] sm:$0xf]
    %v564 = vld [vmem:[%s1 + $0xe8] sm:$0xf]
    %v565 = vld [vmem:[%s1 + $0xec] sm:$0xf]
    %v566 = vld [vmem:[%s1 + $0xf0] sm:$0xf]
    %v567 = vld [vmem:[%s1 + $0xf4] sm:$0xf]
    %v568 = vld [vmem:[%s1 + $0xf8] sm:$0xf]
    %v569 = vld [vmem:[%s1 + $0xfc] sm:$0xf]
    %v570 = vld [vmem:[%s3] sm:$0xf]
    %v571 = vld [vmem:[%s3 + $0x4] sm:$0xf]
    %v572 = vld [vmem:[%s3 + $0x8] sm:$0xf]
    %v573 = vld [vmem:[%s3 + $0xc] sm:$0xf]
    %v638 = vunpack.c.l.b16 %v506
    %v639 = vunpack.c.l.b16 %v507
    %v640 = vunpack.c.l.b16 %v508
    %v641 = vunpack.c.l.b16 %v509
    %v642 = vunpack.c.l.b16 %v510
    %v643 = vunpack.c.l.b16 %v511
    %v644 = vunpack.c.l.b16 %v512
    %v645 = vunpack.c.l.b16 %v513
    %v646 = vunpack.c.l.b16 %v514
    %v647 = vunpack.c.l.b16 %v515
    %v648 = vunpack.c.l.b16 %v516
    %v649 = vunpack.c.l.b16 %v517
    %v650 = vunpack.c.l.b16 %v518
    %v651 = vunpack.c.l.b16 %v519
    %v652 = vunpack.c.l.b16 %v520
    %v653 = vunpack.c.l.b16 %v521
    %v654 = vunpack.c.l.b16 %v522
    %v655 = vunpack.c.l.b16 %v523
    %v656 = vunpack.c.l.b16 %v524
    %v657 = vunpack.c.l.b16 %v525
    %v658 = vunpack.c.l.b16 %v526
    %v659 = vunpack.c.l.b16 %v527
    %v660 = vunpack.c.l.b16 %v528
    %v661 = vunpack.c.l.b16 %v529
    %v662 = vunpack.c.l.b16 %v530
    %v663 = vunpack.c.l.b16 %v531
    %v664 = vunpack.c.l.b16 %v532
    %v665 = vunpack.c.l.b16 %v533
    %v666 = vunpack.c.l.b16 %v534
    %v667 = vunpack.c.l.b16 %v535
    %v668 = vunpack.c.l.b16 %v536
    %v669 = vunpack.c.l.b16 %v537
    %v670 = vunpack.c.l.b16 %v538
    %v671 = vunpack.c.l.b16 %v539
    %v672 = vunpack.c.l.b16 %v540
    %v673 = vunpack.c.l.b16 %v541
    %v674 = vunpack.c.l.b16 %v542
    %v675 = vunpack.c.l.b16 %v543
    %v676 = vunpack.c.l.b16 %v544
    %v677 = vunpack.c.l.b16 %v545
    %v678 = vunpack.c.l.b16 %v546
    %v679 = vunpack.c.l.b16 %v547
    %v680 = vunpack.c.l.b16 %v548
    %v681 = vunpack.c.l.b16 %v549
    %v682 = vunpack.c.l.b16 %v550
    %v683 = vunpack.c.l.b16 %v551
    %v684 = vunpack.c.l.b16 %v552
    %v685 = vunpack.c.l.b16 %v553
    %v686 = vunpack.c.l.b16 %v554
    %v687 = vunpack.c.l.b16 %v555
    %v688 = vunpack.c.l.b16 %v556
    %v689 = vunpack.c.l.b16 %v557
    %v690 = vunpack.c.l.b16 %v558
    %v691 = vunpack.c.l.b16 %v559
    %v692 = vunpack.c.l.b16 %v560
    %v693 = vunpack.c.l.b16 %v561
    %v694 = vunpack.c.l.b16 %v562
    %v695 = vunpack.c.l.b16 %v563
    %v696 = vunpack.c.l.b16 %v564
    %v697 = vunpack.c.l.b16 %v565
    %v698 = vunpack.c.l.b16 %v566
    %v699 = vunpack.c.l.b16 %v567
    %v700 = vunpack.c.l.b16 %v568
    %v701 = vunpack.c.l.b16 %v569
    %v702 = vpack.c.b16 %v639, %v638
    %v703 = vpack.c.b16 %v641, %v640
    %v704 = vpack.c.b16 %v643, %v642
    %v705 = vpack.c.b16 %v645, %v644
    %v706 = vpack.c.b16 %v647, %v646
    %v707 = vpack.c.b16 %v649, %v648
    %v708 = vpack.c.b16 %v651, %v650
    %v709 = vpack.c.b16 %v653, %v652
    %v710 = vpack.c.b16 %v655, %v654
    %v711 = vpack.c.b16 %v657, %v656
    %v712 = vpack.c.b16 %v659, %v658
    %v713 = vpack.c.b16 %v661, %v660
    %v714 = vpack.c.b16 %v663, %v662
    %v715 = vpack.c.b16 %v665, %v664
    %v716 = vpack.c.b16 %v667, %v666
    %v717 = vpack.c.b16 %v669, %v668
    %v718 = vpack.c.b16 %v671, %v670
    %v719 = vpack.c.b16 %v673, %v672
    %v720 = vpack.c.b16 %v675, %v674
    %v721 = vpack.c.b16 %v677, %v676
    %v722 = vpack.c.b16 %v679, %v678
    %v723 = vpack.c.b16 %v681, %v680
    %v724 = vpack.c.b16 %v683, %v682
    %v725 = vpack.c.b16 %v685, %v684
    %v726 = vpack.c.b16 %v687, %v686
    %v727 = vpack.c.b16 %v689, %v688
    %v728 = vpack.c.b16 %v691, %v690
    %v729 = vpack.c.b16 %v693, %v692
    %v730 = vpack.c.b16 %v695, %v694
    %v731 = vpack.c.b16 %v697, %v696
    %v732 = vpack.c.b16 %v699, %v698
    %v733 = vpack.c.b16 %v701, %v700
    %v738 = vunpack.c.l.b16 %v570
    %v739 = vunpack.c.l.b16 %v571
    %v740 = vunpack.c.l.b16 %v572
    %v741 = vunpack.c.l.b16 %v573
    %v742 = vpack.c.b16 %v739, %v738
    %v743 = vpack.c.b16 %v741, %v740
    %vm746 = vcmask 261120
    %v748 = vsel %vm746, %v702, 0
    %v751 = vsel %vm746, %v703, 0
    %v754 = vsel %vm746, %v704, 0
    %v757 = vsel %vm746, %v705, 0
    %v760 = vsel %vm746, %v706, 0
    %v763 = vsel %vm746, %v707, 0
    %v766 = vsel %vm746, %v708, 0
    %v769 = vsel %vm746, %v709, 0
    %v772 = vsel %vm746, %v710, 0
    %v775 = vsel %vm746, %v711, 0
    %v778 = vsel %vm746, %v712, 0
    %v781 = vsel %vm746, %v713, 0
    %v784 = vsel %vm746, %v714, 0
    %v787 = vsel %vm746, %v715, 0
    %v790 = vsel %vm746, %v716, 0
    %v793 = vsel %vm746, %v717, 0
    %v796 = vsel %vm746, %v718, 0
    %v799 = vsel %vm746, %v719, 0
    %v802 = vsel %vm746, %v720, 0
    %v805 = vsel %vm746, %v721, 0
    %v808 = vsel %vm746, %v722, 0
    %v811 = vsel %vm746, %v723, 0
    %v814 = vsel %vm746, %v724, 0
    %v817 = vsel %vm746, %v725, 0
    %v820 = vsel %vm746, %v726, 0
    %v823 = vsel %vm746, %v727, 0
    %v826 = vsel %vm746, %v728, 0
    %v829 = vsel %vm746, %v729, 0
    %v832 = vsel %vm746, %v730, 0
    %v835 = vsel %vm746, %v731, 0
    %v838 = vsel %vm746, %v732, 0
    %v841 = vsel %vm746, %v733, 0
    %843 = vmatpush.bf16.msra.mxu0 0
    %844 = vmatpush.bf16.msra.mxu0 0
    %845 = vmatpush.bf16.msra.mxu0 0
    %846 = vmatpush.bf16.msra.mxu0 0
    %847 = vmatpush.bf16.msra.mxu0 0
    %848 = vmatpush.bf16.msra.mxu0 0
    %849 = vmatpush.bf16.msra.mxu0 %v743
    %850 = vmatpush.bf16.msra.mxu0 %v742
    %851 = vmatmul.bf16.gmra.mxu0 %v748
    %v852 = vpop.f32.mrf.mxu0
    %v853 = vadd.f32 0.0, %v852
    %v854 = vpop.f32.mrf.mxu0
    %v855 = vadd.f32 0.0, %v854
    %856 = vmatmul.bf16.gmra.mxu0 %v751
    %v857 = vpop.f32.mrf.mxu0
    %v858 = vadd.f32 0.0, %v857
    %v859 = vpop.f32.mrf.mxu0
    %v860 = vadd.f32 0.0, %v859
    %861 = vmatmul.bf16.gmra.mxu0 %v754
    %v862 = vpop.f32.mrf.mxu0
    %v863 = vadd.f32 0.0, %v862
    %v864 = vpop.f32.mrf.mxu0
    %v865 = vadd.f32 0.0, %v864
    %866 = vmatmul.bf16.gmra.mxu0 %v757
    %v867 = vpop.f32.mrf.mxu0
    %v868 = vadd.f32 0.0, %v867
    %v869 = vpop.f32.mrf.mxu0
    %v870 = vadd.f32 0.0, %v869
    %871 = vmatmul.bf16.gmra.mxu0 %v760
    %v872 = vpop.f32.mrf.mxu0
    %v873 = vadd.f32 0.0, %v872
    %v874 = vpop.f32.mrf.mxu0
    %v875 = vadd.f32 0.0, %v874
    %876 = vmatmul.bf16.gmra.mxu0 %v763
    %v877 = vpop.f32.mrf.mxu0
    %v878 = vadd.f32 0.0, %v877
    %v879 = vpop.f32.mrf.mxu0
    %v880 = vadd.f32 0.0, %v879
    %881 = vmatmul.bf16.gmra.mxu0 %v766
    %v882 = vpop.f32.mrf.mxu0
    %v883 = vadd.f32 0.0, %v882
    %v884 = vpop.f32.mrf.mxu0
    %v885 = vadd.f32 0.0, %v884
    %886 = vmatmul.bf16.gmra.mxu0 %v769
    %v887 = vpop.f32.mrf.mxu0
    %v888 = vadd.f32 0.0, %v887
    %v889 = vpop.f32.mrf.mxu0
    %v890 = vadd.f32 0.0, %v889
    %891 = vmatmul.bf16.gmra.mxu0 %v772
    %v892 = vpop.f32.mrf.mxu0
    %v893 = vadd.f32 0.0, %v892
    %v894 = vpop.f32.mrf.mxu0
    %v895 = vadd.f32 0.0, %v894
    %896 = vmatmul.bf16.gmra.mxu0 %v775
    %v897 = vpop.f32.mrf.mxu0
    %v898 = vadd.f32 0.0, %v897
    %v899 = vpop.f32.mrf.mxu0
    %v900 = vadd.f32 0.0, %v899
    %901 = vmatmul.bf16.gmra.mxu0 %v778
    %v902 = vpop.f32.mrf.mxu0
    %v903 = vadd.f32 0.0, %v902
    %v904 = vpop.f32.mrf.mxu0
    %v905 = vadd.f32 0.0, %v904
    %906 = vmatmul.bf16.gmra.mxu0 %v781
    %v907 = vpop.f32.mrf.mxu0
    %v908 = vadd.f32 0.0, %v907
    %v909 = vpop.f32.mrf.mxu0
    %v910 = vadd.f32 0.0, %v909
    %911 = vmatmul.bf16.gmra.mxu0 %v784
    %v912 = vpop.f32.mrf.mxu0
    %v913 = vadd.f32 0.0, %v912
    %v914 = vpop.f32.mrf.mxu0
    %v915 = vadd.f32 0.0, %v914
    %916 = vmatmul.bf16.gmra.mxu0 %v787
    %v917 = vpop.f32.mrf.mxu0
    %v918 = vadd.f32 0.0, %v917
    %v919 = vpop.f32.mrf.mxu0
    %v920 = vadd.f32 0.0, %v919
    %921 = vmatmul.bf16.gmra.mxu0 %v790
    %v922 = vpop.f32.mrf.mxu0
    %v923 = vadd.f32 0.0, %v922
    %v924 = vpop.f32.mrf.mxu0
    %v925 = vadd.f32 0.0, %v924
    %926 = vmatmul.bf16.gmra.mxu0 %v793
    %v927 = vpop.f32.mrf.mxu0
    %v928 = vadd.f32 0.0, %v927
    %v929 = vpop.f32.mrf.mxu0
    %v930 = vadd.f32 0.0, %v929
    %931 = vmatmul.bf16.gmra.mxu0 %v796
    %v932 = vpop.f32.mrf.mxu0
    %v933 = vadd.f32 0.0, %v932
    %v934 = vpop.f32.mrf.mxu0
    %v935 = vadd.f32 0.0, %v934
    %936 = vmatmul.bf16.gmra.mxu0 %v799
    %v937 = vpop.f32.mrf.mxu0
    %v938 = vadd.f32 0.0, %v937
    %v939 = vpop.f32.mrf.mxu0
    %v940 = vadd.f32 0.0, %v939
    %941 = vmatmul.bf16.gmra.mxu0 %v802
    %v942 = vpop.f32.mrf.mxu0
    %v943 = vadd.f32 0.0, %v942
    %v944 = vpop.f32.mrf.mxu0
    %v945 = vadd.f32 0.0, %v944
    %946 = vmatmul.bf16.gmra.mxu0 %v805
    %v947 = vpop.f32.mrf.mxu0
    %v948 = vadd.f32 0.0, %v947
    %v949 = vpop.f32.mrf.mxu0
    %v950 = vadd.f32 0.0, %v949
    %951 = vmatmul.bf16.gmra.mxu0 %v808
    %v952 = vpop.f32.mrf.mxu0
    %v953 = vadd.f32 0.0, %v952
    %v954 = vpop.f32.mrf.mxu0
    %v955 = vadd.f32 0.0, %v954
    %956 = vmatmul.bf16.gmra.mxu0 %v811
    %v957 = vpop.f32.mrf.mxu0
    %v958 = vadd.f32 0.0, %v957
    %v959 = vpop.f32.mrf.mxu0
    %v960 = vadd.f32 0.0, %v959
    %961 = vmatmul.bf16.gmra.mxu0 %v814
    %v962 = vpop.f32.mrf.mxu0
    %v963 = vadd.f32 0.0, %v962
    %v964 = vpop.f32.mrf.mxu0
    %v965 = vadd.f32 0.0, %v964
    %966 = vmatmul.bf16.gmra.mxu0 %v817
    %v967 = vpop.f32.mrf.mxu0
    %v968 = vadd.f32 0.0, %v967
    %v969 = vpop.f32.mrf.mxu0
    %v970 = vadd.f32 0.0, %v969
    %971 = vmatmul.bf16.gmra.mxu0 %v820
    %v972 = vpop.f32.mrf.mxu0
    %v973 = vadd.f32 0.0, %v972
    %v974 = vpop.f32.mrf.mxu0
    %v975 = vadd.f32 0.0, %v974
    %976 = vmatmul.bf16.gmra.mxu0 %v823
    %v977 = vpop.f32.mrf.mxu0
    %v978 = vadd.f32 0.0, %v977
    %v979 = vpop.f32.mrf.mxu0
    %v980 = vadd.f32 0.0, %v979
    %981 = vmatmul.bf16.gmra.mxu0 %v826
    %v982 = vpop.f32.mrf.mxu0
    %v983 = vadd.f32 0.0, %v982
    %v984 = vpop.f32.mrf.mxu0
    %v985 = vadd.f32 0.0, %v984
    %986 = vmatmul.bf16.gmra.mxu0 %v829
    %v987 = vpop.f32.mrf.mxu0
    %v988 = vadd.f32 0.0, %v987
    %v989 = vpop.f32.mrf.mxu0
    %v990 = vadd.f32 0.0, %v989
    %991 = vmatmul.bf16.gmra.mxu0 %v832
    %v992 = vpop.f32.mrf.mxu0
    %v993 = vadd.f32 0.0, %v992
    %v994 = vpop.f32.mrf.mxu0
    %v995 = vadd.f32 0.0, %v994
    %996 = vmatmul.bf16.gmra.mxu0 %v835
    %v997 = vpop.f32.mrf.mxu0
    %v998 = vadd.f32 0.0, %v997
    %v999 = vpop.f32.mrf.mxu0
    %v1000 = vadd.f32 0.0, %v999
    %1001 = vmatmul.bf16.gmra.mxu0 %v838
    %v1002 = vpop.f32.mrf.mxu0
    %v1003 = vadd.f32 0.0, %v1002
    %v1004 = vpop.f32.mrf.mxu0
    %v1005 = vadd.f32 0.0, %v1004
    %1006 = vmatmul.bf16.gmra.mxu0 %v841
    %v1007 = vpop.f32.mrf.mxu0
    %v1008 = vadd.f32 0.0, %v1007
    %v1009 = vpop.f32.mrf.mxu0
    %v1010 = vadd.f32 0.0, %v1009
    %1011 = vdwg.mxu0
    %v1014 = vunpack.c.l.b16 %v504
    %v1015 = vunpack.c.l.b16 %v505
    %v1016 = vpack.c.b16 %v1015, %v1014
    %vm1018 = vcmask 130048
    %v1020 = vsel %vm1018, %v472, 0
    %v1023 = vsel %vm1018, %v473, 0
    %v1026 = vsel %vm1018, %v474, 0
    %v1029 = vsel %vm1018, %v475, 0
    %v1032 = vsel %vm1018, %v476, 0
    %v1035 = vsel %vm1018, %v477, 0
    %v1038 = vsel %vm1018, %v478, 0
    %v1041 = vsel %vm1018, %v479, 0
    %v1044 = vsel %vm1018, %v480, 0
    %v1047 = vsel %vm1018, %v481, 0
    %v1050 = vsel %vm1018, %v482, 0
    %v1053 = vsel %vm1018, %v483, 0
    %v1056 = vsel %vm1018, %v484, 0
    %v1059 = vsel %vm1018, %v485, 0
    %v1062 = vsel %vm1018, %v486, 0
    %v1065 = vsel %vm1018, %v487, 0
    %v1068 = vsel %vm1018, %v488, 0
    %v1071 = vsel %vm1018, %v489, 0
    %v1074 = vsel %vm1018, %v490, 0
    %v1077 = vsel %vm1018, %v491, 0
    %v1080 = vsel %vm1018, %v492, 0
    %v1083 = vsel %vm1018, %v493, 0
    %v1086 = vsel %vm1018, %v494, 0
    %v1089 = vsel %vm1018, %v495, 0
    %v1092 = vsel %vm1018, %v496, 0
    %v1095 = vsel %vm1018, %v497, 0
    %v1098 = vsel %vm1018, %v498, 0
    %v1101 = vsel %vm1018, %v499, 0
    %v1104 = vsel %vm1018, %v500, 0
    %v1107 = vsel %vm1018, %v501, 0
    %v1110 = vsel %vm1018, %v502, 0
    %v1113 = vsel %vm1018, %v503, 0
    %1115 = vmatpush.bf16.msra.mxu0 0
    %1116 = vmatpush.bf16.msra.mxu0 0
    %1117 = vmatpush.bf16.msra.mxu0 0
    %1118 = vmatpush.bf16.msra.mxu0 0
    %1119 = vmatpush.bf16.msra.mxu0 0
    %1120 = vmatpush.bf16.msra.mxu0 0
    %1121 = vmatpush.bf16.msra.mxu0 0
    %1122 = vmatpush.bf16.msra.mxu0 %v1016
    %1123 = vmatmul.bf16.gmra.mxu0 %v1020
    %v1124 = vpop.f32.mrf.mxu0
    %v1125 = vadd.f32 %v853, %v1124
    %v1126 = vpop.f32.mrf.mxu0
    %v1127 = vadd.f32 %v855, %v1126
    %1128 = vmatmul.bf16.gmra.mxu0 %v1023
    %v1129 = vpop.f32.mrf.mxu0
    %v1130 = vadd.f32 %v858, %v1129
    %v1131 = vpop.f32.mrf.mxu0
    %v1132 = vadd.f32 %v860, %v1131
    %1133 = vmatmul.bf16.gmra.mxu0 %v1026
    %v1134 = vpop.f32.mrf.mxu0
    %v1135 = vadd.f32 %v863, %v1134
    %v1136 = vpop.f32.mrf.mxu0
    %v1137 = vadd.f32 %v865, %v1136
    %1138 = vmatmul.bf16.gmra.mxu0 %v1029
    %v1139 = vpop.f32.mrf.mxu0
    %v1140 = vadd.f32 %v868, %v1139
    %v1141 = vpop.f32.mrf.mxu0
    %v1142 = vadd.f32 %v870, %v1141
    %1143 = vmatmul.bf16.gmra.mxu0 %v1032
    %v1144 = vpop.f32.mrf.mxu0
    %v1145 = vadd.f32 %v873, %v1144
    %v1146 = vpop.f32.mrf.mxu0
    %v1147 = vadd.f32 %v875, %v1146
    %1148 = vmatmul.bf16.gmra.mxu0 %v1035
    %v1149 = vpop.f32.mrf.mxu0
    %v1150 = vadd.f32 %v878, %v1149
    %v1151 = vpop.f32.mrf.mxu0
    %v1152 = vadd.f32 %v880, %v1151
    %1153 = vmatmul.bf16.gmra.mxu0 %v1038
    %v1154 = vpop.f32.mrf.mxu0
    %v1155 = vadd.f32 %v883, %v1154
    %v1156 = vpop.f32.mrf.mxu0
    %v1157 = vadd.f32 %v885, %v1156
    %1158 = vmatmul.bf16.gmra.mxu0 %v1041
    %v1159 = vpop.f32.mrf.mxu0
    %v1160 = vadd.f32 %v888, %v1159
    %v1161 = vpop.f32.mrf.mxu0
    %v1162 = vadd.f32 %v890, %v1161
    %1163 = vmatmul.bf16.gmra.mxu0 %v1044
    %v1164 = vpop.f32.mrf.mxu0
    %v1165 = vadd.f32 %v893, %v1164
    %v1166 = vpop.f32.mrf.mxu0
    %v1167 = vadd.f32 %v895, %v1166
    %1168 = vmatmul.bf16.gmra.mxu0 %v1047
    %v1169 = vpop.f32.mrf.mxu0
    %v1170 = vadd.f32 %v898, %v1169
    %v1171 = vpop.f32.mrf.mxu0
    %v1172 = vadd.f32 %v900, %v1171
    %1173 = vmatmul.bf16.gmra.mxu0 %v1050
    %v1174 = vpop.f32.mrf.mxu0
    %v1175 = vadd.f32 %v903, %v1174
    %v1176 = vpop.f32.mrf.mxu0
    %v1177 = vadd.f32 %v905, %v1176
    %1178 = vmatmul.bf16.gmra.mxu0 %v1053
    %v1179 = vpop.f32.mrf.mxu0
    %v1180 = vadd.f32 %v908, %v1179
    %v1181 = vpop.f32.mrf.mxu0
    %v1182 = vadd.f32 %v910, %v1181
    %1183 = vmatmul.bf16.gmra.mxu0 %v1056
    %v1184 = vpop.f32.mrf.mxu0
    %v1185 = vadd.f32 %v913, %v1184
    %v1186 = vpop.f32.mrf.mxu0
    %v1187 = vadd.f32 %v915, %v1186
    %1188 = vmatmul.bf16.gmra.mxu0 %v1059
    %v1189 = vpop.f32.mrf.mxu0
    %v1190 = vadd.f32 %v918, %v1189
    %v1191 = vpop.f32.mrf.mxu0
    %v1192 = vadd.f32 %v920, %v1191
    %1193 = vmatmul.bf16.gmra.mxu0 %v1062
    %v1194 = vpop.f32.mrf.mxu0
    %v1195 = vadd.f32 %v923, %v1194
    %v1196 = vpop.f32.mrf.mxu0
    %v1197 = vadd.f32 %v925, %v1196
    %1198 = vmatmul.bf16.gmra.mxu0 %v1065
    %v1199 = vpop.f32.mrf.mxu0
    %v1200 = vadd.f32 %v928, %v1199
    %v1201 = vpop.f32.mrf.mxu0
    %v1202 = vadd.f32 %v930, %v1201
    %1203 = vmatmul.bf16.gmra.mxu0 %v1068
    %v1204 = vpop.f32.mrf.mxu0
    %v1205 = vadd.f32 %v933, %v1204
    %v1206 = vpop.f32.mrf.mxu0
    %v1207 = vadd.f32 %v935, %v1206
    %1208 = vmatmul.bf16.gmra.mxu0 %v1071
    %v1209 = vpop.f32.mrf.mxu0
    %v1210 = vadd.f32 %v938, %v1209
    %v1211 = vpop.f32.mrf.mxu0
    %v1212 = vadd.f32 %v940, %v1211
    %1213 = vmatmul.bf16.gmra.mxu0 %v1074
    %v1214 = vpop.f32.mrf.mxu0
    %v1215 = vadd.f32 %v943, %v1214
    %v1216 = vpop.f32.mrf.mxu0
    %v1217 = vadd.f32 %v945, %v1216
    %1218 = vmatmul.bf16.gmra.mxu0 %v1077
    %v1219 = vpop.f32.mrf.mxu0
    %v1220 = vadd.f32 %v948, %v1219
    %v1221 = vpop.f32.mrf.mxu0
    %v1222 = vadd.f32 %v950, %v1221
    %1223 = vmatmul.bf16.gmra.mxu0 %v1080
    %v1224 = vpop.f32.mrf.mxu0
    %v1225 = vadd.f32 %v953, %v1224
    %v1226 = vpop.f32.mrf.mxu0
    %v1227 = vadd.f32 %v955, %v1226
    %1228 = vmatmul.bf16.gmra.mxu0 %v1083
    %v1229 = vpop.f32.mrf.mxu0
    %v1230 = vadd.f32 %v958, %v1229
    %v1231 = vpop.f32.mrf.mxu0
    %v1232 = vadd.f32 %v960, %v1231
    %1233 = vmatmul.bf16.gmra.mxu0 %v1086
    %v1234 = vpop.f32.mrf.mxu0
    %v1235 = vadd.f32 %v963, %v1234
    %v1236 = vpop.f32.mrf.mxu0
    %v1237 = vadd.f32 %v965, %v1236
    %1238 = vmatmul.bf16.gmra.mxu0 %v1089
    %v1239 = vpop.f32.mrf.mxu0
    %v1240 = vadd.f32 %v968, %v1239
    %v1241 = vpop.f32.mrf.mxu0
    %v1242 = vadd.f32 %v970, %v1241
    %1243 = vmatmul.bf16.gmra.mxu0 %v1092
    %v1244 = vpop.f32.mrf.mxu0
    %v1245 = vadd.f32 %v973, %v1244
    %v1246 = vpop.f32.mrf.mxu0
    %v1247 = vadd.f32 %v975, %v1246
    %1248 = vmatmul.bf16.gmra.mxu0 %v1095
    %v1249 = vpop.f32.mrf.mxu0
    %v1250 = vadd.f32 %v978, %v1249
    %v1251 = vpop.f32.mrf.mxu0
    %v1252 = vadd.f32 %v980, %v1251
    %1253 = vmatmul.bf16.gmra.mxu0 %v1098
    %v1254 = vpop.f32.mrf.mxu0
    %v1255 = vadd.f32 %v983, %v1254
    %v1256 = vpop.f32.mrf.mxu0
    %v1257 = vadd.f32 %v985, %v1256
    %1258 = vmatmul.bf16.gmra.mxu0 %v1101
    %v1259 = vpop.f32.mrf.mxu0
    %v1260 = vadd.f32 %v988, %v1259
    %v1261 = vpop.f32.mrf.mxu0
    %v1262 = vadd.f32 %v990, %v1261
    %1263 = vmatmul.bf16.gmra.mxu0 %v1104
    %v1264 = vpop.f32.mrf.mxu0
    %v1265 = vadd.f32 %v993, %v1264
    %v1266 = vpop.f32.mrf.mxu0
    %v1267 = vadd.f32 %v995, %v1266
    %1268 = vmatmul.bf16.gmra.mxu0 %v1107
    %v1269 = vpop.f32.mrf.mxu0
    %v1270 = vadd.f32 %v998, %v1269
    %v1271 = vpop.f32.mrf.mxu0
    %v1272 = vadd.f32 %v1000, %v1271
    %1273 = vmatmul.bf16.gmra.mxu0 %v1110
    %v1274 = vpop.f32.mrf.mxu0
    %v1275 = vadd.f32 %v1003, %v1274
    %v1276 = vpop.f32.mrf.mxu0
    %v1277 = vadd.f32 %v1005, %v1276
    %1278 = vmatmul.bf16.gmra.mxu0 %v1113
    %v1279 = vpop.f32.mrf.mxu0
    %v1280 = vadd.f32 %v1008, %v1279
    %v1281 = vpop.f32.mrf.mxu0
    %v1282 = vadd.f32 %v1010, %v1281
    %1283 = vdwg.mxu0
    %v1284 = vld [vmem:[%s4] sm:$0x1]
    %v1286 = vperm.slane %v1284, 0
    %v1288 = vadd.f32 %v1125, %v1286
    %v1289 = vadd.f32 %v1127, %v1286
    %v1290 = vadd.f32 %v1130, %v1286
    %v1291 = vadd.f32 %v1132, %v1286
    %v1292 = vadd.f32 %v1135, %v1286
    %v1293 = vadd.f32 %v1137, %v1286
    %v1294 = vadd.f32 %v1140, %v1286
    %v1295 = vadd.f32 %v1142, %v1286
    %v1296 = vadd.f32 %v1145, %v1286
    %v1297 = vadd.f32 %v1147, %v1286
    %v1298 = vadd.f32 %v1150, %v1286
    %v1299 = vadd.f32 %v1152, %v1286
    %v1300 = vadd.f32 %v1155, %v1286
    %v1301 = vadd.f32 %v1157, %v1286
    %v1302 = vadd.f32 %v1160, %v1286
    %v1303 = vadd.f32 %v1162, %v1286
    %v1304 = vadd.f32 %v1165, %v1286
    %v1305 = vadd.f32 %v1167, %v1286
    %v1306 = vadd.f32 %v1170, %v1286
    %v1307 = vadd.f32 %v1172, %v1286
    %v1308 = vadd.f32 %v1175, %v1286
    %v1309 = vadd.f32 %v1177, %v1286
    %v1310 = vadd.f32 %v1180, %v1286
    %v1311 = vadd.f32 %v1182, %v1286
    %v1312 = vadd.f32 %v1185, %v1286
    %v1313 = vadd.f32 %v1187, %v1286
    %v1314 = vadd.f32 %v1190, %v1286
    %v1315 = vadd.f32 %v1192, %v1286
    %v1316 = vadd.f32 %v1195, %v1286
    %v1317 = vadd.f32 %v1197, %v1286
    %v1318 = vadd.f32 %v1200, %v1286
    %v1319 = vadd.f32 %v1202, %v1286
    %v1320 = vadd.f32 %v1205, %v1286
    %v1321 = vadd.f32 %v1207, %v1286
    %v1322 = vadd.f32 %v1210, %v1286
    %v1323 = vadd.f32 %v1212, %v1286
    %v1324 = vadd.f32 %v1215, %v1286
    %v1325 = vadd.f32 %v1217, %v1286
    %v1326 = vadd.f32 %v1220, %v1286
    %v1327 = vadd.f32 %v1222, %v1286
    %v1328 = vadd.f32 %v1225, %v1286
    %v1329 = vadd.f32 %v1227, %v1286
    %v1330 = vadd.f32 %v1230, %v1286
    %v1331 = vadd.f32 %v1232, %v1286
    %v1332 = vadd.f32 %v1235, %v1286
    %v1333 = vadd.f32 %v1237, %v1286
    %v1334 = vadd.f32 %v1240, %v1286
    %v1335 = vadd.f32 %v1242, %v1286
    %v1336 = vadd.f32 %v1245, %v1286
    %v1337 = vadd.f32 %v1247, %v1286
    %v1338 = vadd.f32 %v1250, %v1286
    %v1339 = vadd.f32 %v1252, %v1286
    %v1340 = vadd.f32 %v1255, %v1286
    %v1341 = vadd.f32 %v1257, %v1286
    %v1342 = vadd.f32 %v1260, %v1286
    %v1343 = vadd.f32 %v1262, %v1286
    %v1344 = vadd.f32 %v1265, %v1286
    %v1345 = vadd.f32 %v1267, %v1286
    %v1346 = vadd.f32 %v1270, %v1286
    %v1347 = vadd.f32 %v1272, %v1286
    %v1348 = vadd.f32 %v1275, %v1286
    %v1349 = vadd.f32 %v1277, %v1286
    %v1350 = vadd.f32 %v1280, %v1286
    %v1351 = vadd.f32 %v1282, %v1286
    %vm1352 = vcmp.gt.f32.partialorder %v1288, 0.0
    %vm1353 = vcmp.gt.f32.partialorder %v1289, 0.0
    %vm1354 = vcmp.gt.f32.partialorder %v1290, 0.0
    %vm1355 = vcmp.gt.f32.partialorder %v1291, 0.0
    %vm1356 = vcmp.gt.f32.partialorder %v1292, 0.0
    %vm1357 = vcmp.gt.f32.partialorder %v1293, 0.0
    %vm1358 = vcmp.gt.f32.partialorder %v1294, 0.0
    %vm1359 = vcmp.gt.f32.partialorder %v1295, 0.0
    %vm1360 = vcmp.gt.f32.partialorder %v1296, 0.0
    %vm1361 = vcmp.gt.f32.partialorder %v1297, 0.0
    %vm1362 = vcmp.gt.f32.partialorder %v1298, 0.0
    %vm1363 = vcmp.gt.f32.partialorder %v1299, 0.0
    %vm1364 = vcmp.gt.f32.partialorder %v1300, 0.0
    %vm1365 = vcmp.gt.f32.partialorder %v1301, 0.0
    %vm1366 = vcmp.gt.f32.partialorder %v1302, 0.0
    %vm1367 = vcmp.gt.f32.partialorder %v1303, 0.0
    %vm1368 = vcmp.gt.f32.partialorder %v1304, 0.0
    %vm1369 = vcmp.gt.f32.partialorder %v1305, 0.0
    %vm1370 = vcmp.gt.f32.partialorder %v1306, 0.0
    %vm1371 = vcmp.gt.f32.partialorder %v1307, 0.0
    %vm1372 = vcmp.gt.f32.partialorder %v1308, 0.0
    %vm1373 = vcmp.gt.f32.partialorder %v1309, 0.0
    %vm1374 = vcmp.gt.f32.partialorder %v1310, 0.0
    %vm1375 = vcmp.gt.f32.partialorder %v1311, 0.0
    %vm1376 = vcmp.gt.f32.partialorder %v1312, 0.0
    %vm1377 = vcmp.gt.f32.partialorder %v1313, 0.0
    %vm1378 = vcmp.gt.f32.partialorder %v1314, 0.0
    %vm1379 = vcmp.gt.f32.partialorder %v1315, 0.0
    %vm1380 = vcmp.gt.f32.partialorder %v1316, 0.0
    %vm1381 = vcmp.gt.f32.partialorder %v1317, 0.0
    %vm1382 = vcmp.gt.f32.partialorder %v1318, 0.0
    %vm1383 = vcmp.gt.f32.partialorder %v1319, 0.0
    %vm1384 = vcmp.gt.f32.partialorder %v1320, 0.0
    %vm1385 = vcmp.gt.f32.partialorder %v1321, 0.0
    %vm1386 = vcmp.gt.f32.partialorder %v1322, 0.0
    %vm1387 = vcmp.gt.f32.partialorder %v1323, 0.0
    %vm1388 = vcmp.gt.f32.partialorder %v1324, 0.0
    %vm1389 = vcmp.gt.f32.partialorder %v1325, 0.0
    %vm1390 = vcmp.gt.f32.partialorder %v1326, 0.0
    %vm1391 = vcmp.gt.f32.partialorder %v1327, 0.0
    %vm1392 = vcmp.gt.f32.partialorder %v1328, 0.0
    %vm1393 = vcmp.gt.f32.partialorder %v1329, 0.0
    %vm1394 = vcmp.gt.f32.partialorder %v1330, 0.0
    %vm1395 = vcmp.gt.f32.partialorder %v1331, 0.0
    %vm1396 = vcmp.gt.f32.partialorder %v1332, 0.0
    %vm1397 = vcmp.gt.f32.partialorder %v1333, 0.0
    %vm1398 = vcmp.gt.f32.partialorder %v1334, 0.0
    %vm1399 = vcmp.gt.f32.partialorder %v1335, 0.0
    %vm1400 = vcmp.gt.f32.partialorder %v1336, 0.0
    %vm1401 = vcmp.gt.f32.partialorder %v1337, 0.0
    %vm1402 = vcmp.gt.f32.partialorder %v1338, 0.0
    %vm1403 = vcmp.gt.f32.partialorder %v1339, 0.0
    %vm1404 = vcmp.gt.f32.partialorder %v1340, 0.0
    %vm1405 = vcmp.gt.f32.partialorder %v1341, 0.0
    %vm1406 = vcmp.gt.f32.partialorder %v1342, 0.0
    %vm1407 = vcmp.gt.f32.partialorder %v1343, 0.0
    %vm1408 = vcmp.gt.f32.partialorder %v1344, 0.0
    %vm1409 = vcmp.gt.f32.partialorder %v1345, 0.0
    %vm1410 = vcmp.gt.f32.partialorder %v1346, 0.0
    %vm1411 = vcmp.gt.f32.partialorder %v1347, 0.0
    %vm1412 = vcmp.gt.f32.partialorder %v1348, 0.0
    %vm1413 = vcmp.gt.f32.partialorder %v1349, 0.0
    %vm1414 = vcmp.gt.f32.partialorder %v1350, 0.0
    %vm1415 = vcmp.gt.f32.partialorder %v1351, 0.0
    %v1416 = vmul.f32 %v1288, 0.2
    %v1417 = vmul.f32 %v1289, 0.2
    %v1418 = vmul.f32 %v1290, 0.2
    %v1419 = vmul.f32 %v1291, 0.2
    %v1420 = vmul.f32 %v1292, 0.2
    %v1421 = vmul.f32 %v1293, 0.2
    %v1422 = vmul.f32 %v1294, 0.2
    %v1423 = vmul.f32 %v1295, 0.2
    %v1424 = vmul.f32 %v1296, 0.2
    %v1425 = vmul.f32 %v1297, 0.2
    %v1426 = vmul.f32 %v1298, 0.2
    %v1427 = vmul.f32 %v1299, 0.2
    %v1428 = vmul.f32 %v1300, 0.2
    %v1429 = vmul.f32 %v1301, 0.2
    %v1430 = vmul.f32 %v1302, 0.2
    %v1431 = vmul.f32 %v1303, 0.2
    %v1432 = vmul.f32 %v1304, 0.2
    %v1433 = vmul.f32 %v1305, 0.2
    %v1434 = vmul.f32 %v1306, 0.2
    %v1435 = vmul.f32 %v1307, 0.2
    %v1436 = vmul.f32 %v1308, 0.2
    %v1437 = vmul.f32 %v1309, 0.2
    %v1438 = vmul.f32 %v1310, 0.2
    %v1439 = vmul.f32 %v1311, 0.2
    %v1440 = vmul.f32 %v1312, 0.2
    %v1441 = vmul.f32 %v1313, 0.2
    %v1442 = vmul.f32 %v1314, 0.2
    %v1443 = vmul.f32 %v1315, 0.2
    %v1444 = vmul.f32 %v1316, 0.2
    %v1445 = vmul.f32 %v1317, 0.2
    %v1446 = vmul.f32 %v1318, 0.2
    %v1447 = vmul.f32 %v1319, 0.2
    %v1448 = vmul.f32 %v1320, 0.2
    %v1449 = vmul.f32 %v1321, 0.2
    %v1450 = vmul.f32 %v1322, 0.2
    %v1451 = vmul.f32 %v1323, 0.2
    %v1452 = vmul.f32 %v1324, 0.2
    %v1453 = vmul.f32 %v1325, 0.2
    %v1454 = vmul.f32 %v1326, 0.2
    %v1455 = vmul.f32 %v1327, 0.2
    %v1456 = vmul.f32 %v1328, 0.2
    %v1457 = vmul.f32 %v1329, 0.2
    %v1458 = vmul.f32 %v1330, 0.2
    %v1459 = vmul.f32 %v1331, 0.2
    %v1460 = vmul.f32 %v1332, 0.2
    %v1461 = vmul.f32 %v1333, 0.2
    %v1462 = vmul.f32 %v1334, 0.2
    %v1463 = vmul.f32 %v1335, 0.2
    %v1464 = vmul.f32 %v1336, 0.2
    %v1465 = vmul.f32 %v1337, 0.2
    %v1466 = vmul.f32 %v1338, 0.2
    %v1467 = vmul.f32 %v1339, 0.2
    %v1468 = vmul.f32 %v1340, 0.2
    %v1469 = vmul.f32 %v1341, 0.2
    %v1470 = vmul.f32 %v1342, 0.2
    %v1471 = vmul.f32 %v1343, 0.2
    %v1472 = vmul.f32 %v1344, 0.2
    %v1473 = vmul.f32 %v1345, 0.2
    %v1474 = vmul.f32 %v1346, 0.2
    %v1475 = vmul.f32 %v1347, 0.2
    %v1476 = vmul.f32 %v1348, 0.2
    %v1477 = vmul.f32 %v1349, 0.2
    %v1478 = vmul.f32 %v1350, 0.2
    %v1479 = vmul.f32 %v1351, 0.2
    %v1480 = vsel %vm1352, %v1288, %v1416
    %v1481 = vsel %vm1353, %v1289, %v1417
    %v1482 = vsel %vm1354, %v1290, %v1418
    %v1483 = vsel %vm1355, %v1291, %v1419
    %v1484 = vsel %vm1356, %v1292, %v1420
    %v1485 = vsel %vm1357, %v1293, %v1421
    %v1486 = vsel %vm1358, %v1294, %v1422
    %v1487 = vsel %vm1359, %v1295, %v1423
    %v1488 = vsel %vm1360, %v1296, %v1424
    %v1489 = vsel %vm1361, %v1297, %v1425
    %v1490 = vsel %vm1362, %v1298, %v1426
    %v1491 = vsel %vm1363, %v1299, %v1427
    %v1492 = vsel %vm1364, %v1300, %v1428
    %v1493 = vsel %vm1365, %v1301, %v1429
    %v1494 = vsel %vm1366, %v1302, %v1430
    %v1495 = vsel %vm1367, %v1303, %v1431
    %v1496 = vsel %vm1368, %v1304, %v1432
    %v1497 = vsel %vm1369, %v1305, %v1433
    %v1498 = vsel %vm1370, %v1306, %v1434
    %v1499 = vsel %vm1371, %v1307, %v1435
    %v1500 = vsel %vm1372, %v1308, %v1436
    %v1501 = vsel %vm1373, %v1309, %v1437
    %v1502 = vsel %vm1374, %v1310, %v1438
    %v1503 = vsel %vm1375, %v1311, %v1439
    %v1504 = vsel %vm1376, %v1312, %v1440
    %v1505 = vsel %vm1377, %v1313, %v1441
    %v1506 = vsel %vm1378, %v1314, %v1442
    %v1507 = vsel %vm1379, %v1315, %v1443
    %v1508 = vsel %vm1380, %v1316, %v1444
    %v1509 = vsel %vm1381, %v1317, %v1445
    %v1510 = vsel %vm1382, %v1318, %v1446
    %v1511 = vsel %vm1383, %v1319, %v1447
    %v1512 = vsel %vm1384, %v1320, %v1448
    %v1513 = vsel %vm1385, %v1321, %v1449
    %v1514 = vsel %vm1386, %v1322, %v1450
    %v1515 = vsel %vm1387, %v1323, %v1451
    %v1516 = vsel %vm1388, %v1324, %v1452
    %v1517 = vsel %vm1389, %v1325, %v1453
    %v1518 = vsel %vm1390, %v1326, %v1454
    %v1519 = vsel %vm1391, %v1327, %v1455
    %v1520 = vsel %vm1392, %v1328, %v1456
    %v1521 = vsel %vm1393, %v1329, %v1457
    %v1522 = vsel %vm1394, %v1330, %v1458
    %v1523 = vsel %vm1395, %v1331, %v1459
    %v1524 = vsel %vm1396, %v1332, %v1460
    %v1525 = vsel %vm1397, %v1333, %v1461
    %v1526 = vsel %vm1398, %v1334, %v1462
    %v1527 = vsel %vm1399, %v1335, %v1463
    %v1528 = vsel %vm1400, %v1336, %v1464
    %v1529 = vsel %vm1401, %v1337, %v1465
    %v1530 = vsel %vm1402, %v1338, %v1466
    %v1531 = vsel %vm1403, %v1339, %v1467
    %v1532 = vsel %vm1404, %v1340, %v1468
    %v1533 = vsel %vm1405, %v1341, %v1469
    %v1534 = vsel %vm1406, %v1342, %v1470
    %v1535 = vsel %vm1407, %v1343, %v1471
    %v1536 = vsel %vm1408, %v1344, %v1472
    %v1537 = vsel %vm1409, %v1345, %v1473
    %v1538 = vsel %vm1410, %v1346, %v1474
    %v1539 = vsel %vm1411, %v1347, %v1475
    %v1540 = vsel %vm1412, %v1348, %v1476
    %v1541 = vsel %vm1413, %v1349, %v1477
    %v1542 = vsel %vm1414, %v1350, %v1478
    %v1543 = vsel %vm1415, %v1351, %v1479
    %1544 = vst [vmem:[#allocation2] sm:$0xff] %v1480
    %1545 = vst [vmem:[#allocation2 + $0x8] sm:$0xff] %v1481
    %1546 = vst [vmem:[#allocation2 + $0x10] sm:$0xff] %v1482
    %1547 = vst [vmem:[#allocation2 + $0x18] sm:$0xff] %v1483
    %1548 = vst [vmem:[#allocation2 + $0x20] sm:$0xff] %v1484
    %1549 = vst [vmem:[#allocation2 + $0x28] sm:$0xff] %v1485
    %1550 = vst [vmem:[#allocation2 + $0x30] sm:$0xff] %v1486
    %1551 = vst [vmem:[#allocation2 + $0x38] sm:$0xff] %v1487
    %1552 = vst [vmem:[#allocation2 + $0x40] sm:$0xff] %v1488
    %1553 = vst [vmem:[#allocation2 + $0x48] sm:$0xff] %v1489
    %1554 = vst [vmem:[#allocation2 + $0x50] sm:$0xff] %v1490
    %1555 = vst [vmem:[#allocation2 + $0x58] sm:$0xff] %v1491
    %1556 = vst [vmem:[#allocation2 + $0x60] sm:$0xff] %v1492
    %1557 = vst [vmem:[#allocation2 + $0x68] sm:$0xff] %v1493
    %1558 = vst [vmem:[#allocation2 + $0x70] sm:$0xff] %v1494
    %1559 = vst [vmem:[#allocation2 + $0x78] sm:$0xff] %v1495
    %1560 = vst [vmem:[#allocation2 + $0x80] sm:$0xff] %v1496
    %1561 = vst [vmem:[#allocation2 + $0x88] sm:$0xff] %v1497
    %1562 = vst [vmem:[#allocation2 + $0x90] sm:$0xff] %v1498
    %1563 = vst [vmem:[#allocation2 + $0x98] sm:$0xff] %v1499
    %1564 = vst [vmem:[#allocation2 + $0xa0] sm:$0xff] %v1500
    %1565 = vst [vmem:[#allocation2 + $0xa8] sm:$0xff] %v1501
    %1566 = vst [vmem:[#allocation2 + $0xb0] sm:$0xff] %v1502
    %1567 = vst [vmem:[#allocation2 + $0xb8] sm:$0xff] %v1503
    %1568 = vst [vmem:[#allocation2 + $0xc0] sm:$0xff] %v1504
    %1569 = vst [vmem:[#allocation2 + $0xc8] sm:$0xff] %v1505
    %1570 = vst [vmem:[#allocation2 + $0xd0] sm:$0xff] %v1506
    %1571 = vst [vmem:[#allocation2 + $0xd8] sm:$0xff] %v1507
    %1572 = vst [vmem:[#allocation2 + $0xe0] sm:$0xff] %v1508
    %1573 = vst [vmem:[#allocation2 + $0xe8] sm:$0xff] %v1509
    %1574 = vst [vmem:[#allocation2 + $0xf0] sm:$0xff] %v1510
    %1575 = vst [vmem:[#allocation2 + $0xf8] sm:$0xff] %v1511
    %1576 = vst [vmem:[#allocation2 + $0x100] sm:$0xff] %v1512
    %1577 = vst [vmem:[#allocation2 + $0x108] sm:$0xff] %v1513
    %1578 = vst [vmem:[#allocation2 + $0x110] sm:$0xff] %v1514
    %1579 = vst [vmem:[#allocation2 + $0x118] sm:$0xff] %v1515
    %1580 = vst [vmem:[#allocation2 + $0x120] sm:$0xff] %v1516
    %1581 = vst [vmem:[#allocation2 + $0x128] sm:$0xff] %v1517
    %1582 = vst [vmem:[#allocation2 + $0x130] sm:$0xff] %v1518
    %1583 = vst [vmem:[#allocation2 + $0x138] sm:$0xff] %v1519
    %1584 = vst [vmem:[#allocation2 + $0x140] sm:$0xff] %v1520
    %1585 = vst [vmem:[#allocation2 + $0x148] sm:$0xff] %v1521
    %1586 = vst [vmem:[#allocation2 + $0x150] sm:$0xff] %v1522
    %1587 = vst [vmem:[#allocation2 + $0x158] sm:$0xff] %v1523
    %1588 = vst [vmem:[#allocation2 + $0x160] sm:$0xff] %v1524
    %1589 = vst [vmem:[#allocation2 + $0x168] sm:$0xff] %v1525
    %1590 = vst [vmem:[#allocation2 + $0x170] sm:$0xff] %v1526
    %1591 = vst [vmem:[#allocation2 + $0x178] sm:$0xff] %v1527
    %1592 = vst [vmem:[#allocation2 + $0x180] sm:$0xff] %v1528
    %1593 = vst [vmem:[#allocation2 + $0x188] sm:$0xff] %v1529
    %1594 = vst [vmem:[#allocation2 + $0x190] sm:$0xff] %v1530
    %1595 = vst [vmem:[#allocation2 + $0x198] sm:$0xff] %v1531
    %1596 = vst [vmem:[#allocation2 + $0x1a0] sm:$0xff] %v1532
    %1597 = vst [vmem:[#allocation2 + $0x1a8] sm:$0xff] %v1533
    %1598 = vst [vmem:[#allocation2 + $0x1b0] sm:$0xff] %v1534
    %1599 = vst [vmem:[#allocation2 + $0x1b8] sm:$0xff] %v1535
    %1600 = vst [vmem:[#allocation2 + $0x1c0] sm:$0xff] %v1536
    %1601 = vst [vmem:[#allocation2 + $0x1c8] sm:$0xff] %v1537
    %1602 = vst [vmem:[#allocation2 + $0x1d0] sm:$0xff] %v1538
    %1603 = vst [vmem:[#allocation2 + $0x1d8] sm:$0xff] %v1539
    %1604 = vst [vmem:[#allocation2 + $0x1e0] sm:$0xff] %v1540
    %1605 = vst [vmem:[#allocation2 + $0x1e8] sm:$0xff] %v1541
    %1606 = vst [vmem:[#allocation2 + $0x1f0] sm:$0xff] %v1542
    %1607 = vst [vmem:[#allocation2 + $0x1f8] sm:$0xff] %v1543
    // Predicated region
    $region22: #{tpu_custom_call.1} parent=1 // pred_check
      _
    $region23: #{tpu_custom_call.1} parent=1 // pred_check_branch
      %1609 = sbr.rel (0) target = $region25
    $region24: #{tpu_custom_call.1} parent=1 // pred_region
      %1611 = vsyncadd [#allocation3], 0
      %s1612 = sshll.u32 [#allocation2], 4
      %s1613 = int_to_ptr.vmem [resolvable:$true] %s1612
      %s1614 = sshll.u32 %s5, 4
      %s1615 = int_to_ptr.hbm [resolvable:$true] %s1614
      %1620 = dma.vmem_to_hbm [thread:$0]  %s1613, 8192, %s1615, [#allocation3], 128, 128, 8
    $region25: #{tpu_custom_call.1} parent=1 // pred_fallthru
      _
    // Predicated region
    $region26: #{tpu_custom_call.1} parent=1 // pred_check
      _
    $region27: #{tpu_custom_call.1} parent=1 // pred_check_branch
      %1622 = sbr.rel (0) target = $region29
    $region28: #{tpu_custom_call.1} parent=1 // pred_region
      %1624 = dma.done [#allocation3], 8192
    $region29: #{tpu_custom_call.1} parent=1 // pred_fallthru
      _
    %1625 = vsyncpa [#allocation3], 1

</llo_original>
